<compile_context>
chip_gen: v5e
topology: v5e:2x2
jax: 0.10.0
libtpu: 0.0.40
codegen_flags: <defaults>
</compile_context>

<pallas_src>
import functools
import math

import jax
import jax.numpy as jnp
from jax.experimental import pallas as pl
from jax.experimental.pallas import tpu as pltpu

# 48 MiB scoped-VMEM request: leaves headroom under v7x's 64 MiB physical VMEM for Mosaic's
# internal scratch/semaphores; on v5e/v6e (128 MiB) this can be raised together with larger tiles.
VMEM_LIMIT_BYTES = 48 * 1024 * 1024


# ------------------------------- small helpers --------------------------------

def _round_up(a, m):
    return (a + m - 1) // m * m


def _row_tile(num_tokens, batch, target=256):
    """Row tile for the (token*B, D) layout: must hold whole token groups (multiple of B) and be
    sublane-aligned (multiple of 8).  Growth is capped so the row grid has >= 2 steps whenever
    possible (both TensorCores busy on v7x)."""
    base = (8 * batch) // math.gcd(8, batch)          # lcm(8, batch)
    total = num_tokens * batch
    tm = base
    while tm * 2 <= target and tm * 4 <= total:       # tm*4 <= total keeps >= 2 row blocks
        tm *= 2
    return tm


def _col_tile(F, target=512):
    """Tile for the FFN hidden dimension: multiple of 128 dividing F, or F itself."""
    if F <= target:
        return F
    tf = (target // 128) * 128
    while tf >= 128:
        if F % tf == 0:
            return tf
        tf -= 128
    return F


def _layer_norm(x, w, b, eps=1e-5):
    mu = jnp.mean(x, axis=-1, keepdims=True)
    xc = x - mu
    var = jnp.mean(xc * xc, axis=-1, keepdims=True)
    return xc * jax.lax.rsqrt(var + eps) * w + b


def _roll_within_groups(x, r, batch):
    """x: (tm, d) with rows laid out in contiguous groups of `batch` (token-major).
    Returns y with y[g*B + b] = x[g*B + (b + r) % B]  (rotation inside each group)."""
    if r == 0:
        return x
    tm = x.shape[0]
    down = jnp.roll(x, -r, axis=0)              # row i -> x[i + r]       (valid while b + r <  B)
    up = jnp.roll(x, batch - r, axis=0)         # row i -> x[i + r - B]   (valid while b + r >= B)
    b_idx = jax.lax.broadcasted_iota(jnp.int32, (tm, 1), 0) % batch
    return jnp.where(b_idx + r >= batch, up, down)


# ---------------------------------- kernels ------------------------------------

def matmul_bias_kernel(x_ref, w_ref, b_ref, o_ref):
    # x: (tr, K) f32, w: (K, N) bf16 (pre-transposed), b: (1, N) f32
    o_ref[...] = (jnp.dot(x_ref[...].astype(jnp.bfloat16), w_ref[...],
                          preferred_element_type=jnp.float32) + b_ref[...])


def attn_block_kernel(z_ref, wi_ref, bi_ref, wo_ref, bo_ref, lnw_ref, lnb_ref, o_ref,
                      *, num_heads, head_dim, batch):
    """Fused: qkv projection -> block-diagonal attention (over the image axis, per token)
    -> per-head-accumulated out-projection -> residual -> LayerNorm1.

    Rows of the tile are (token, image) pairs, token-major, so every contiguous group of
    `batch` rows is one attention group.  Scores are computed per group offset r on the VPU
    (within-group roll + mul + lane reduce) -- no (tm, tm) score matrix, no mask, no head
    concat.  The 1/sqrt(head_dim) scale is folded into wi/bi (Q third) at prepare time."""
    D = num_heads * head_dim
    z = z_ref[...]                                                   # (tm, D) f32

    qkv = (jnp.dot(z.astype(jnp.bfloat16), wi_ref[...],
                   preferred_element_type=jnp.float32) + bi_ref[...])   # (tm, 3D) f32, VMEM only

    attn_out = jnp.zeros_like(z)                                     # f32 out-proj accumulator
    for h in range(num_heads):
        lo = h * head_dim
        qh = qkv[:, lo:lo + head_dim]
        kh = qkv[:, D + lo:D + lo + head_dim]
        vh = qkv[:, 2 * D + lo:2 * D + lo + head_dim]

        k_rolled = [_roll_within_groups(kh, r, batch) for r in range(batch)]
        v_rolled = [_roll_within_groups(vh, r, batch) for r in range(batch)]
        scores = [jnp.sum(qh * kr, axis=-1, keepdims=True) for kr in k_rolled]   # B x (tm, 1)

        m = scores[0]
        for s in scores[1:]:
            m = jnp.maximum(m, s)
        probs = [jnp.exp(s - m) for s in scores]
        denom = probs[0]
        for p in probs[1:]:
            denom = denom + p
        o_h = probs[0] * v_rolled[0]
        for p, vr in zip(probs[1:], v_rolled[1:]):
            o_h = o_h + p * vr
        o_h = o_h * pl.reciprocal(denom, approx=True)                # (tm, hd) f32

        # per-head contribution to the out-projection (no concat over heads)
        attn_out = attn_out + jnp.dot(o_h.astype(jnp.bfloat16),
                                      wo_ref[lo:lo + head_dim, :],
                                      preferred_element_type=jnp.float32)

    y = z + attn_out + bo_ref[...]
    o_ref[...] = _layer_norm(y, lnw_ref[...], lnb_ref[...])


def ffn_ln_kernel(z_ref, w1_ref, b1_ref, w2_ref, b2_ref, lnw_ref, lnb_ref, o_ref, acc_ref):
    """Fused FFN: out = LN2(z + relu(z @ W1 + b1) @ W2 + b2).  The F axis is the last grid dim;
    partial lin2 products accumulate in an f32 VMEM scratch, so the (tm, F) hidden never hits HBM.
    Matmul operands are bf16 (native MXU); accumulation / LN stays f32."""
    f = pl.program_id(1)

    @pl.when(f == 0)
    def _init():
        acc_ref[...] = jnp.zeros_like(acc_ref)

    h = (jnp.dot(z_ref[...].astype(jnp.bfloat16), w1_ref[...],
                 preferred_element_type=jnp.float32) + b1_ref[...])
    h = jnp.maximum(h, 0.0).astype(jnp.bfloat16)
    acc_ref[...] += jnp.dot(h, w2_ref[...], preferred_element_type=jnp.float32)

    @pl.when(f == pl.num_programs(1) - 1)
    def _finalize():
        y = z_ref[...] + acc_ref[...] + b2_ref[...]
        o_ref[...] = _layer_norm(y, lnw_ref[...], lnb_ref[...])


# ------------------------------ parameter prep ---------------------------------

def prepare_params(params, *, num_heads):
    """One-time weight transposes / reshapes, bf16 cast, and folding of the 1/sqrt(head_dim)
    attention scale into the Q third of in_proj (zero per-forward weight transposes)."""
    D = params['conv_w'].shape[0]
    hd = D // num_heads
    scale = 1.0 / float(hd) ** 0.5
    bf16 = jnp.bfloat16

    prep = {
        'pe_w': params['conv_w'].reshape(D, -1).T.astype(bf16),     # (C*P*P, D) bf16
        'pe_b': params['conv_b'].reshape(1, D),
        'cls_token': params['cls_token'],
        'pos_embed': params['pos_embed'],
        'norm_w': params['norm_w'].reshape(1, D),
        'norm_b': params['norm_b'].reshape(1, D),
    }
    layers = []
    qscale = jnp.concatenate([jnp.full((D,), scale, jnp.float32),
                              jnp.ones((2 * D,), jnp.float32)])     # scale only the Q third
    for lp in params['layers']:
        F = lp['lin1_w'].shape[0]
        layers.append(dict(
            in_w=(lp['in_w'] * qscale[:, None]).T.astype(bf16),     # (D, 3D) bf16
            in_b=(lp['in_b'] * qscale).reshape(1, 3 * D),
            out_w=lp['out_w'].T.astype(bf16), out_b=lp['out_b'].reshape(1, D),
            ln1_w=lp['ln1_w'].reshape(1, D), ln1_b=lp['ln1_b'].reshape(1, D),
            lin1_w=lp['lin1_w'].T.astype(bf16), lin1_b=lp['lin1_b'].reshape(1, F),
            lin2_w=lp['lin2_w'].T.astype(bf16), lin2_b=lp['lin2_b'].reshape(1, D),
            ln2_w=lp['ln2_w'].reshape(1, D), ln2_b=lp['ln2_b'].reshape(1, D),
        ))
    prep['layers'] = layers
    return prep


# --------------------------------- forward -------------------------------------

def vit_forward_pallas(x, prep, *, patch, num_heads):
    B, C, H, W = x.shape
    D = prep['pe_w'].shape[1]
    hd = D // num_heads
    hp, wp = H // patch, W // patch

    # --- patch embedding: im2col (one-time XLA glue) + tiled matmul kernel ---
    p = x.reshape(B, C, hp, patch, wp, patch).transpose(0, 2, 4, 1, 3, 5)
    p = p.reshape(B * hp * wp, C * patch * patch)
    Np, Kpe = p.shape
    tr = 256 if Np >= 256 else _round_up(Np, 8)
    Np_pad = _round_up(Np, tr)
    if Np_pad != Np:
        p = jnp.pad(p, ((0, Np_pad - Np), (0, 0)))
    tok = pl.pallas_call(
        matmul_bias_kernel,
        out_shape=jax.ShapeDtypeStruct((Np_pad, D), jnp.float32),
        grid=(Np_pad // tr,),
        in_specs=[pl.BlockSpec((tr, Kpe), lambda i: (i, 0)),
                  pl.BlockSpec((Kpe, D), lambda i: (0, 0)),
                  pl.BlockSpec((1, D), lambda i: (0, 0))],
        out_specs=pl.BlockSpec((tr, D), lambda i: (i, 0)),
        compiler_params=pltpu.CompilerParams(
            dimension_semantics=("parallel",), vmem_limit_bytes=VMEM_LIMIT_BYTES),
    )(p, prep['pe_w'], prep['pe_b'])
    tok = tok[:Np].reshape(B, hp * wp, D)

    # --- cls token + positional embedding (cheap one-time glue) ---
    cls = jnp.broadcast_to(prep['cls_token'], (B, 1, D))
    z = jnp.concatenate([cls, tok], axis=1) + prep['pos_embed']      # (B, S, D)
    S = z.shape[1]

    # seq-first layout (batch_first=False): attention mixes over the image axis per token.
    z = z.transpose(1, 0, 2)                                         # (S, B, D)

    tm = _row_tile(S, B)                      # rows per tile (multiple of 8 and of B)
    S_pad = _round_up(S * B, tm) // B
    if S_pad != S:
        z = jnp.pad(z, ((0, S_pad - S), (0, 0), (0, 0)))             # pad whole tokens
    M = S_pad * B
    z2 = z.reshape(M, D)                                             # row = token*B + image
    n_row_blocks = M // tm

    for lp in prep['layers']:
        Fdim = lp['lin1_w'].shape[1]
        tf = _col_tile(Fdim)

        # fused qkv + block-diagonal attention + out-proj + residual + LN1 (in-place on z2)
        z2 = pl.pallas_call(
            functools.partial(attn_block_kernel, num_heads=num_heads, head_dim=hd, batch=B),
            out_shape=jax.ShapeDtypeStruct((M, D), jnp.float32),
            grid=(n_row_blocks,),
            in_specs=[pl.BlockSpec((tm, D), lambda i: (i, 0)),
                      pl.BlockSpec((D, 3 * D), lambda i: (0, 0)),
                      pl.BlockSpec((1, 3 * D), lambda i: (0, 0)),
                      pl.BlockSpec((D, D), lambda i: (0, 0)),
                      pl.BlockSpec((1, D), lambda i: (0, 0)),
                      pl.BlockSpec((1, D), lambda i: (0, 0)),
                      pl.BlockSpec((1, D), lambda i: (0, 0))],
            out_specs=pl.BlockSpec((tm, D), lambda i: (i, 0)),
            input_output_aliases={0: 0},
            compiler_params=pltpu.CompilerParams(
                dimension_semantics=("parallel",), vmem_limit_bytes=VMEM_LIMIT_BYTES),
        )(z2, lp['in_w'], lp['in_b'], lp['out_w'], lp['out_b'], lp['ln1_w'], lp['ln1_b'])

        # fused lin1 + ReLU + lin2 + residual + LN2, hidden kept in the VMEM accumulator
        z2 = pl.pallas_call(
            ffn_ln_kernel,
            out_shape=jax.ShapeDtypeStruct((M, D), jnp.float32),
            grid=(n_row_blocks, Fdim // tf),
            in_specs=[pl.BlockSpec((tm, D), lambda i, f: (i, 0)),
                      pl.BlockSpec((D, tf), lambda i, f: (0, f)),
                      pl.BlockSpec((1, tf), lambda i, f: (0, f)),
                      pl.BlockSpec((tf, D), lambda i, f: (f, 0)),
                      pl.BlockSpec((1, D), lambda i, f: (0, 0)),
                      pl.BlockSpec((1, D), lambda i, f: (0, 0)),
                      pl.BlockSpec((1, D), lambda i, f: (0, 0))],
            out_specs=pl.BlockSpec((tm, D), lambda i, f: (i, 0)),
            scratch_shapes=[pltpu.VMEM((tm, D), jnp.float32)],
            compiler_params=pltpu.CompilerParams(
                dimension_semantics=("parallel", "arbitrary"),
                vmem_limit_bytes=VMEM_LIMIT_BYTES),
        )(z2, lp['lin1_w'], lp['lin1_b'], lp['lin2_w'], lp['lin2_b'], lp['ln2_w'], lp['ln2_b'])

    # final LayerNorm of the cls rows (token 0, all images) == x[:, 0]; a dedicated kernel for a
    # (B, D) tensor is pure launch/HBM overhead, so it stays in plain JAX.
    cls_rows = z2[:B]
    return _layer_norm(cls_rows, prep['norm_w'], prep['norm_b'])     # (B, D)


# --------------------------- pure-JAX f32 reference -----------------------------

def vit_forward_reference(x, params, *, patch, num_heads):
    B, C, H, W = x.shape
    D = params['conv_w'].shape[0]
    hd = D // num_heads
    hp, wp = H // patch, W // patch
    p = x.reshape(B, C, hp, patch, wp, patch).transpose(0, 2, 4, 1, 3, 5).reshape(B * hp * wp, -1)
    tok = (p @ params['conv_w'].reshape(D, -1).T + params['conv_b']).reshape(B, hp * wp, D)
    cls = jnp.broadcast_to(params['cls_token'], (B, 1, D))
    z = jnp.concatenate([cls, tok], axis=1) + params['pos_embed']    # (B, S, D)
    for lp in params['layers']:
        L, N, _ = z.shape  # torch seq-first view: L = B (seq), N = S (batch)
        qkv = z @ lp['in_w'].T + lp['in_b']
        q, k, v = jnp.split(qkv, 3, axis=-1)
        q = q.reshape(L, N, num_heads, hd)
        k = k.reshape(L, N, num_heads, hd)
        v = v.reshape(L, N, num_heads, hd)
        s = jnp.einsum('lnhd,mnhd->nhlm', q, k) / (hd ** 0.5)
        a = jax.nn.softmax(s, axis=-1)
        o = jnp.einsum('nhlm,mnhd->lnhd', a, v).reshape(L, N, D)
        o = o @ lp['out_w'].T + lp['out_b']
        z = _layer_norm(z + o, lp['ln1_w'], lp['ln1_b'])
        f = jnp.maximum(z @ lp['lin1_w'].T + lp['lin1_b'], 0.0) @ lp['lin2_w'].T + lp['lin2_b']
        z = _layer_norm(z + f, lp['ln2_w'], lp['ln2_b'])
    z = _layer_norm(z, params['norm_w'], params['norm_b'])
    return z[:, 0]


# -------------------------------- parameters ------------------------------------

def init_params(key, *, in_channels, patch, embed_dim, depth, num_heads, mlp_ratio, num_patches):
    D = embed_dim
    F = int(D * mlp_ratio)
    keys = jax.random.split(key, 4 + depth)

    def rnd(k, shape, scale=0.05):
        return (scale * jax.random.normal(k, shape)).astype(jnp.float32)

    params = {
        'conv_w': rnd(keys[0], (D, in_channels, patch, patch)),
        'conv_b': rnd(keys[1], (D,)),
        'cls_token': rnd(keys[2], (1, 1, D), 0.02),
        'pos_embed': rnd(keys[3], (1, num_patches + 1, D), 0.02),
        'norm_w': jnp.ones((D,), jnp.float32),
        'norm_b': jnp.zeros((D,), jnp.float32),
    }
    layers = []
    for l in range(depth):
        lk = jax.random.split(keys[4 + l], 8)
        layers.append(dict(
            in_w=rnd(lk[0], (3 * D, D)), in_b=rnd(lk[1], (3 * D,)),
            out_w=rnd(lk[2], (D, D)), out_b=rnd(lk[3], (D,)),
            lin1_w=rnd(lk[4], (F, D)), lin1_b=rnd(lk[5], (F,)),
            lin2_w=rnd(lk[6], (D, F)), lin2_b=rnd(lk[7], (D,)),
            ln1_w=jnp.ones((D,), jnp.float32), ln1_b=jnp.zeros((D,), jnp.float32),
            ln2_w=jnp.ones((D,), jnp.float32), ln2_b=jnp.zeros((D,), jnp.float32),
        ))
    params['layers'] = layers
    return params


# ----------------------------------- main ----------------------------------------

if __name__ == "__main__":
    # small, module-consistent shapes
    B, C, IMG, P = 2, 3, 16, 8
    D, DEPTH, NHEADS, MLP = 32, 2, 4, 4.0
    NUM_PATCHES = (IMG // P) ** 2

    key = jax.random.PRNGKey(0)
    kx, kp = jax.random.split(key)
    x = jax.random.normal(kx, (B, C, IMG, IMG), dtype=jnp.float32)
    params = init_params(kp, in_channels=C, patch=P, embed_dim=D, depth=DEPTH,
                         num_heads=NHEADS, mlp_ratio=MLP, num_patches=NUM_PATCHES)
    prep = prepare_params(params, num_heads=NHEADS)   # one-time transposes / bf16 cast / scale fold

    # note: dropout (p=0.0) is the identity and is omitted.
    fwd = jax.jit(functools.partial(vit_forward_pallas, patch=P, num_heads=NHEADS))
    out = jax.block_until_ready(fwd(x, prep))

    ref = vit_forward_reference(x, params, patch=P, num_heads=NHEADS)

    assert out.shape == (B, D), out.shape
    assert bool(jnp.all(jnp.isfinite(out)))
    # tolerance loosened vs the f32 reference: weights/matmul operands are bf16 in the kernel
    # and the softmax denominator uses pl.reciprocal(approx=True).
    assert jnp.allclose(out, ref, atol=3e-2, rtol=3e-2), float(jnp.max(jnp.abs(out - ref)))
    print("KERNEL_OK")
</pallas_src>

<mosaic_0001>
module attributes {stable_mosaic.version = 11 : i64} {
  func.func @attn_block_kernel(%arg0: i32, %arg1: memref<8x32xf32, #tpu.memory_space<vmem>>, %arg2: memref<32x96xbf16, #tpu.memory_space<vmem>>, %arg3: memref<1x96xf32, #tpu.memory_space<vmem>>, %arg4: memref<32x32xbf16, #tpu.memory_space<vmem>>, %arg5: memref<1x32xf32, #tpu.memory_space<vmem>>, %arg6: memref<1x32xf32, #tpu.memory_space<vmem>>, %arg7: memref<1x32xf32, #tpu.memory_space<vmem>>, %arg8: memref<8x32xf32, #tpu.memory_space<vmem>>) attributes {dimension_semantics = [#tpu.dimension_semantics<parallel>], iteration_bounds = array<i64: 2>, scalar_prefetch = 0 : i64, scratch_operands = 0 : i64, tpu.core_type = #tpu.core_type<tc>, window_params = [{transform_indices = @transform_0, window_bounds = array<i64: 8, 32>}, {pipeline_mode = #tpu.pipeline_mode<synchronous>, transform_indices = @transform_1, window_bounds = array<i64: 32, 96>}, {pipeline_mode = #tpu.pipeline_mode<synchronous>, transform_indices = @transform_2, window_bounds = array<i64: 1, 96>}, {pipeline_mode = #tpu.pipeline_mode<synchronous>, transform_indices = @transform_3, window_bounds = array<i64: 32, 32>}, {pipeline_mode = #tpu.pipeline_mode<synchronous>, transform_indices = @transform_4, window_bounds = array<i64: 1, 32>}, {pipeline_mode = #tpu.pipeline_mode<synchronous>, transform_indices = @transform_5, window_bounds = array<i64: 1, 32>}, {pipeline_mode = #tpu.pipeline_mode<synchronous>, transform_indices = @transform_6, window_bounds = array<i64: 1, 32>}, {transform_indices = @transform_7, window_bounds = array<i64: 8, 32>}]} {
    %c0 = arith.constant 0 : index
    %c0_0 = arith.constant 0 : index
    %0 = vector.load %arg1[%c0, %c0_0] : memref<8x32xf32, #tpu.memory_space<vmem>>, vector<8x32xf32>
    %1 = arith.truncf %0 : vector<8x32xf32> to vector<8x32xbf16>
    %c0_1 = arith.constant 0 : index
    %c0_2 = arith.constant 0 : index
    %2 = vector.load %arg2[%c0_1, %c0_2] : memref<32x96xbf16, #tpu.memory_space<vmem>>, vector<32x96xbf16>
    %cst = arith.constant dense<0.000000e+00> : vector<8x96xf32>
    %3 = tpu.matmul %1, %2, %cst {dimension_numbers = #tpu.dot_dimension_numbers<[1], [0], [0], [1], [0, 0, 1, 1], [], []>} : vector<8x32xbf16>, vector<32x96xbf16>, vector<8x96xf32> -> vector<8x96xf32>
    %c0_3 = arith.constant 0 : index
    %c0_4 = arith.constant 0 : index
    %4 = vector.load %arg3[%c0_3, %c0_4] : memref<1x96xf32, #tpu.memory_space<vmem>>, vector<1x96xf32>
    %5 = vector.broadcast %4 : vector<1x96xf32> to vector<8x96xf32>
    %6 = arith.addf %3, %5 : vector<8x96xf32>
    %cst_5 = arith.constant 0.000000e+00 : f32
    %7 = vector.broadcast %cst_5 : f32 to vector<8x32xf32>
    %8 = vector.extract_strided_slice %6 {offsets = [0, 0], sizes = [8, 8], strides = [1, 1]} : vector<8x96xf32> to vector<8x8xf32>
    %9 = vector.extract_strided_slice %6 {offsets = [0, 32], sizes = [8, 8], strides = [1, 1]} : vector<8x96xf32> to vector<8x8xf32>
    %10 = vector.extract_strided_slice %6 {offsets = [0, 64], sizes = [8, 8], strides = [1, 1]} : vector<8x96xf32> to vector<8x8xf32>
    %11 = vector.extract_strided_slice %9 {offsets = [1, 0], sizes = [7, 8], strides = [1, 1]} : vector<8x8xf32> to vector<7x8xf32>
    %12 = vector.extract_strided_slice %9 {offsets = [0, 0], sizes = [1, 8], strides = [1, 1]} : vector<8x8xf32> to vector<1x8xf32>
    %13 = tpu.concatenate %11, %12 in 0 : vector<7x8xf32>, vector<1x8xf32> -> vector<8x8xf32>
    %14 = vector.extract_strided_slice %9 {offsets = [7, 0], sizes = [1, 8], strides = [1, 1]} : vector<8x8xf32> to vector<1x8xf32>
    %15 = vector.extract_strided_slice %9 {offsets = [0, 0], sizes = [7, 8], strides = [1, 1]} : vector<8x8xf32> to vector<7x8xf32>
    %16 = tpu.concatenate %14, %15 in 0 : vector<1x8xf32>, vector<7x8xf32> -> vector<8x8xf32>
    %17 = tpu.iota {dimensions = array<i32: 0>} : vector<8x1xi32>
    %c2_i32 = arith.constant 2 : i32
    %c0_i32 = arith.constant 0 : i32
    %18 = arith.cmpi eq, %c2_i32, %c0_i32 : i32
    %c1_i32 = arith.constant 1 : i32
    %19 = arith.select %18, %c1_i32, %c2_i32 : i32
    %20 = vector.broadcast %19 : i32 to vector<8x1xi32>
    %21 = arith.remsi %17, %20 : vector<8x1xi32>
    %c0_i32_6 = arith.constant 0 : i32
    %22 = vector.broadcast %c0_i32_6 : i32 to vector<8x1xi32>
    %23 = arith.cmpi ne, %21, %22 : vector<8x1xi32>
    %c0_i32_7 = arith.constant 0 : i32
    %24 = vector.broadcast %c0_i32_7 : i32 to vector<8x1xi32>
    %25 = arith.cmpi slt, %21, %24 : vector<8x1xi32>
    %c0_i32_8 = arith.constant 0 : i32
    %26 = arith.cmpi slt, %19, %c0_i32_8 : i32
    %27 = vector.broadcast %26 : i1 to vector<8x1xi1>
    %28 = vector.broadcast %27 : vector<8x1xi1> to vector<8x1xi1>
    %29 = arith.xori %25, %28 : vector<8x1xi1>
    %30 = arith.andi %29, %23 : vector<8x1xi1>
    %31 = vector.broadcast %19 : i32 to vector<8x1xi32>
    %32 = arith.addi %21, %31 : vector<8x1xi32>
    %33 = arith.select %30, %32, %21 : vector<8x1xi1>, vector<8x1xi32>
    %c1_i32_9 = arith.constant 1 : i32
    %34 = vector.broadcast %c1_i32_9 : i32 to vector<8x1xi32>
    %35 = arith.addi %33, %34 : vector<8x1xi32>
    %c2_i32_10 = arith.constant 2 : i32
    %36 = vector.broadcast %c2_i32_10 : i32 to vector<8x1xi32>
    %37 = arith.cmpi sge, %35, %36 : vector<8x1xi32>
    %38 = vector.shape_cast %37 : vector<8x1xi1> to vector<8x1xi1>
    %39 = vector.broadcast %38 : vector<8x1xi1> to vector<8x8xi1>
    %40 = arith.select %39, %16, %13 : vector<8x8xi1>, vector<8x8xf32>
    %41 = vector.extract_strided_slice %10 {offsets = [1, 0], sizes = [7, 8], strides = [1, 1]} : vector<8x8xf32> to vector<7x8xf32>
    %42 = vector.extract_strided_slice %10 {offsets = [0, 0], sizes = [1, 8], strides = [1, 1]} : vector<8x8xf32> to vector<1x8xf32>
    %43 = tpu.concatenate %41, %42 in 0 : vector<7x8xf32>, vector<1x8xf32> -> vector<8x8xf32>
    %44 = vector.extract_strided_slice %10 {offsets = [7, 0], sizes = [1, 8], strides = [1, 1]} : vector<8x8xf32> to vector<1x8xf32>
    %45 = vector.extract_strided_slice %10 {offsets = [0, 0], sizes = [7, 8], strides = [1, 1]} : vector<8x8xf32> to vector<7x8xf32>
    %46 = tpu.concatenate %44, %45 in 0 : vector<1x8xf32>, vector<7x8xf32> -> vector<8x8xf32>
    %47 = tpu.iota {dimensions = array<i32: 0>} : vector<8x1xi32>
    %c2_i32_11 = arith.constant 2 : i32
    %c0_i32_12 = arith.constant 0 : i32
    %48 = arith.cmpi eq, %c2_i32_11, %c0_i32_12 : i32
    %c1_i32_13 = arith.constant 1 : i32
    %49 = arith.select %48, %c1_i32_13, %c2_i32_11 : i32
    %50 = vector.broadcast %49 : i32 to vector<8x1xi32>
    %51 = arith.remsi %47, %50 : vector<8x1xi32>
    %c0_i32_14 = arith.constant 0 : i32
    %52 = vector.broadcast %c0_i32_14 : i32 to vector<8x1xi32>
    %53 = arith.cmpi ne, %51, %52 : vector<8x1xi32>
    %c0_i32_15 = arith.constant 0 : i32
    %54 = vector.broadcast %c0_i32_15 : i32 to vector<8x1xi32>
    %55 = arith.cmpi slt, %51, %54 : vector<8x1xi32>
    %c0_i32_16 = arith.constant 0 : i32
    %56 = arith.cmpi slt, %49, %c0_i32_16 : i32
    %57 = vector.broadcast %56 : i1 to vector<8x1xi1>
    %58 = vector.broadcast %57 : vector<8x1xi1> to vector<8x1xi1>
    %59 = arith.xori %55, %58 : vector<8x1xi1>
    %60 = arith.andi %59, %53 : vector<8x1xi1>
    %61 = vector.broadcast %49 : i32 to vector<8x1xi32>
    %62 = arith.addi %51, %61 : vector<8x1xi32>
    %63 = arith.select %60, %62, %51 : vector<8x1xi1>, vector<8x1xi32>
    %c1_i32_17 = arith.constant 1 : i32
    %64 = vector.broadcast %c1_i32_17 : i32 to vector<8x1xi32>
    %65 = arith.addi %63, %64 : vector<8x1xi32>
    %c2_i32_18 = arith.constant 2 : i32
    %66 = vector.broadcast %c2_i32_18 : i32 to vector<8x1xi32>
    %67 = arith.cmpi sge, %65, %66 : vector<8x1xi32>
    %68 = vector.shape_cast %67 : vector<8x1xi1> to vector<8x1xi1>
    %69 = vector.broadcast %68 : vector<8x1xi1> to vector<8x8xi1>
    %70 = arith.select %69, %46, %43 : vector<8x8xi1>, vector<8x8xf32>
    %71 = arith.mulf %8, %9 : vector<8x8xf32>
    %cst_19 = arith.constant dense<0.000000e+00> : vector<8xf32>
    %72 = vector.multi_reduction <add>, %71, %cst_19 [1] : vector<8x8xf32> to vector<8xf32>
    %73 = vector.shape_cast %72 : vector<8xf32> to vector<8x1xf32>
    %74 = arith.mulf %8, %40 : vector<8x8xf32>
    %cst_20 = arith.constant dense<0.000000e+00> : vector<8xf32>
    %75 = vector.multi_reduction <add>, %74, %cst_20 [1] : vector<8x8xf32> to vector<8xf32>
    %76 = vector.shape_cast %75 : vector<8xf32> to vector<8x1xf32>
    %77 = arith.maximumf %73, %76 : vector<8x1xf32>
    %78 = arith.subf %73, %77 : vector<8x1xf32>
    %79 = math.exp %78 : vector<8x1xf32>
    %80 = arith.subf %76, %77 : vector<8x1xf32>
    %81 = math.exp %80 : vector<8x1xf32>
    %82 = arith.addf %79, %81 : vector<8x1xf32>
    %83 = vector.broadcast %79 : vector<8x1xf32> to vector<8x8xf32>
    %84 = arith.mulf %83, %10 : vector<8x8xf32>
    %85 = vector.broadcast %81 : vector<8x1xf32> to vector<8x8xf32>
    %86 = arith.mulf %85, %70 : vector<8x8xf32>
    %87 = arith.addf %84, %86 : vector<8x8xf32>
    %88 = tpu.reciprocal %82 {approx = true} : vector<8x1xf32> -> vector<8x1xf32>
    %89 = vector.broadcast %88 : vector<8x1xf32> to vector<8x8xf32>
    %90 = arith.mulf %87, %89 : vector<8x8xf32>
    %91 = arith.truncf %90 : vector<8x8xf32> to vector<8x8xbf16>
    %c0_21 = arith.constant 0 : index
    %c0_22 = arith.constant 0 : index
    %92 = vector.load %arg4[%c0_21, %c0_22] : memref<32x32xbf16, #tpu.memory_space<vmem>>, vector<8x32xbf16>
    %cst_23 = arith.constant dense<0.000000e+00> : vector<8x32xf32>
    %93 = tpu.matmul %91, %92, %cst_23 {dimension_numbers = #tpu.dot_dimension_numbers<[1], [0], [0], [1], [0, 0, 1, 1], [], []>} : vector<8x8xbf16>, vector<8x32xbf16>, vector<8x32xf32> -> vector<8x32xf32>
    %94 = arith.addf %7, %93 : vector<8x32xf32>
    %95 = vector.extract_strided_slice %6 {offsets = [0, 8], sizes = [8, 8], strides = [1, 1]} : vector<8x96xf32> to vector<8x8xf32>
    %96 = vector.extract_strided_slice %6 {offsets = [0, 40], sizes = [8, 8], strides = [1, 1]} : vector<8x96xf32> to vector<8x8xf32>
    %97 = vector.extract_strided_slice %6 {offsets = [0, 72], sizes = [8, 8], strides = [1, 1]} : vector<8x96xf32> to vector<8x8xf32>
    %98 = vector.extract_strided_slice %96 {offsets = [1, 0], sizes = [7, 8], strides = [1, 1]} : vector<8x8xf32> to vector<7x8xf32>
    %99 = vector.extract_strided_slice %96 {offsets = [0, 0], sizes = [1, 8], strides = [1, 1]} : vector<8x8xf32> to vector<1x8xf32>
    %100 = tpu.concatenate %98, %99 in 0 : vector<7x8xf32>, vector<1x8xf32> -> vector<8x8xf32>
    %101 = vector.extract_strided_slice %96 {offsets = [7, 0], sizes = [1, 8], strides = [1, 1]} : vector<8x8xf32> to vector<1x8xf32>
    %102 = vector.extract_strided_slice %96 {offsets = [0, 0], sizes = [7, 8], strides = [1, 1]} : vector<8x8xf32> to vector<7x8xf32>
    %103 = tpu.concatenate %101, %102 in 0 : vector<1x8xf32>, vector<7x8xf32> -> vector<8x8xf32>
    %104 = tpu.iota {dimensions = array<i32: 0>} : vector<8x1xi32>
    %c2_i32_24 = arith.constant 2 : i32
    %c0_i32_25 = arith.constant 0 : i32
    %105 = arith.cmpi eq, %c2_i32_24, %c0_i32_25 : i32
    %c1_i32_26 = arith.constant 1 : i32
    %106 = arith.select %105, %c1_i32_26, %c2_i32_24 : i32
    %107 = vector.broadcast %106 : i32 to vector<8x1xi32>
    %108 = arith.remsi %104, %107 : vector<8x1xi32>
    %c0_i32_27 = arith.constant 0 : i32
    %109 = vector.broadcast %c0_i32_27 : i32 to vector<8x1xi32>
    %110 = arith.cmpi ne, %108, %109 : vector<8x1xi32>
    %c0_i32_28 = arith.constant 0 : i32
    %111 = vector.broadcast %c0_i32_28 : i32 to vector<8x1xi32>
    %112 = arith.cmpi slt, %108, %111 : vector<8x1xi32>
    %c0_i32_29 = arith.constant 0 : i32
    %113 = arith.cmpi slt, %106, %c0_i32_29 : i32
    %114 = vector.broadcast %113 : i1 to vector<8x1xi1>
    %115 = vector.broadcast %114 : vector<8x1xi1> to vector<8x1xi1>
    %116 = arith.xori %112, %115 : vector<8x1xi1>
    %117 = arith.andi %116, %110 : vector<8x1xi1>
    %118 = vector.broadcast %106 : i32 to vector<8x1xi32>
    %119 = arith.addi %108, %118 : vector<8x1xi32>
    %120 = arith.select %117, %119, %108 : vector<8x1xi1>, vector<8x1xi32>
    %c1_i32_30 = arith.constant 1 : i32
    %121 = vector.broadcast %c1_i32_30 : i32 to vector<8x1xi32>
    %122 = arith.addi %120, %121 : vector<8x1xi32>
    %c2_i32_31 = arith.constant 2 : i32
    %123 = vector.broadcast %c2_i32_31 : i32 to vector<8x1xi32>
    %124 = arith.cmpi sge, %122, %123 : vector<8x1xi32>
    %125 = vector.shape_cast %124 : vector<8x1xi1> to vector<8x1xi1>
    %126 = vector.broadcast %125 : vector<8x1xi1> to vector<8x8xi1>
    %127 = arith.select %126, %103, %100 : vector<8x8xi1>, vector<8x8xf32>
    %128 = vector.extract_strided_slice %97 {offsets = [1, 0], sizes = [7, 8], strides = [1, 1]} : vector<8x8xf32> to vector<7x8xf32>
    %129 = vector.extract_strided_slice %97 {offsets = [0, 0], sizes = [1, 8], strides = [1, 1]} : vector<8x8xf32> to vector<1x8xf32>
    %130 = tpu.concatenate %128, %129 in 0 : vector<7x8xf32>, vector<1x8xf32> -> vector<8x8xf32>
    %131 = vector.extract_strided_slice %97 {offsets = [7, 0], sizes = [1, 8], strides = [1, 1]} : vector<8x8xf32> to vector<1x8xf32>
    %132 = vector.extract_strided_slice %97 {offsets = [0, 0], sizes = [7, 8], strides = [1, 1]} : vector<8x8xf32> to vector<7x8xf32>
    %133 = tpu.concatenate %131, %132 in 0 : vector<1x8xf32>, vector<7x8xf32> -> vector<8x8xf32>
    %134 = tpu.iota {dimensions = array<i32: 0>} : vector<8x1xi32>
    %c2_i32_32 = arith.constant 2 : i32
    %c0_i32_33 = arith.constant 0 : i32
    %135 = arith.cmpi eq, %c2_i32_32, %c0_i32_33 : i32
    %c1_i32_34 = arith.constant 1 : i32
    %136 = arith.select %135, %c1_i32_34, %c2_i32_32 : i32
    %137 = vector.broadcast %136 : i32 to vector<8x1xi32>
    %138 = arith.remsi %134, %137 : vector<8x1xi32>
    %c0_i32_35 = arith.constant 0 : i32
    %139 = vector.broadcast %c0_i32_35 : i32 to vector<8x1xi32>
    %140 = arith.cmpi ne, %138, %139 : vector<8x1xi32>
    %c0_i32_36 = arith.constant 0 : i32
    %141 = vector.broadcast %c0_i32_36 : i32 to vector<8x1xi32>
    %142 = arith.cmpi slt, %138, %141 : vector<8x1xi32>
    %c0_i32_37 = arith.constant 0 : i32
    %143 = arith.cmpi slt, %136, %c0_i32_37 : i32
    %144 = vector.broadcast %143 : i1 to vector<8x1xi1>
    %145 = vector.broadcast %144 : vector<8x1xi1> to vector<8x1xi1>
    %146 = arith.xori %142, %145 : vector<8x1xi1>
    %147 = arith.andi %146, %140 : vector<8x1xi1>
    %148 = vector.broadcast %136 : i32 to vector<8x1xi32>
    %149 = arith.addi %138, %148 : vector<8x1xi32>
    %150 = arith.select %147, %149, %138 : vector<8x1xi1>, vector<8x1xi32>
    %c1_i32_38 = arith.constant 1 : i32
    %151 = vector.broadcast %c1_i32_38 : i32 to vector<8x1xi32>
    %152 = arith.addi %150, %151 : vector<8x1xi32>
    %c2_i32_39 = arith.constant 2 : i32
    %153 = vector.broadcast %c2_i32_39 : i32 to vector<8x1xi32>
    %154 = arith.cmpi sge, %152, %153 : vector<8x1xi32>
    %155 = vector.shape_cast %154 : vector<8x1xi1> to vector<8x1xi1>
    %156 = vector.broadcast %155 : vector<8x1xi1> to vector<8x8xi1>
    %157 = arith.select %156, %133, %130 : vector<8x8xi1>, vector<8x8xf32>
    %158 = arith.mulf %95, %96 : vector<8x8xf32>
    %cst_40 = arith.constant dense<0.000000e+00> : vector<8xf32>
    %159 = vector.multi_reduction <add>, %158, %cst_40 [1] : vector<8x8xf32> to vector<8xf32>
    %160 = vector.shape_cast %159 : vector<8xf32> to vector<8x1xf32>
    %161 = arith.mulf %95, %127 : vector<8x8xf32>
    %cst_41 = arith.constant dense<0.000000e+00> : vector<8xf32>
    %162 = vector.multi_reduction <add>, %161, %cst_41 [1] : vector<8x8xf32> to vector<8xf32>
    %163 = vector.shape_cast %162 : vector<8xf32> to vector<8x1xf32>
    %164 = arith.maximumf %160, %163 : vector<8x1xf32>
    %165 = arith.subf %160, %164 : vector<8x1xf32>
    %166 = math.exp %165 : vector<8x1xf32>
    %167 = arith.subf %163, %164 : vector<8x1xf32>
    %168 = math.exp %167 : vector<8x1xf32>
    %169 = arith.addf %166, %168 : vector<8x1xf32>
    %170 = vector.broadcast %166 : vector<8x1xf32> to vector<8x8xf32>
    %171 = arith.mulf %170, %97 : vector<8x8xf32>
    %172 = vector.broadcast %168 : vector<8x1xf32> to vector<8x8xf32>
    %173 = arith.mulf %172, %157 : vector<8x8xf32>
    %174 = arith.addf %171, %173 : vector<8x8xf32>
    %175 = tpu.reciprocal %169 {approx = true} : vector<8x1xf32> -> vector<8x1xf32>
    %176 = vector.broadcast %175 : vector<8x1xf32> to vector<8x8xf32>
    %177 = arith.mulf %174, %176 : vector<8x8xf32>
    %178 = arith.truncf %177 : vector<8x8xf32> to vector<8x8xbf16>
    %c8 = arith.constant 8 : index
    %c0_42 = arith.constant 0 : index
    %179 = vector.load %arg4[%c8, %c0_42] : memref<32x32xbf16, #tpu.memory_space<vmem>>, vector<8x32xbf16>
    %cst_43 = arith.constant dense<0.000000e+00> : vector<8x32xf32>
    %180 = tpu.matmul %178, %179, %cst_43 {dimension_numbers = #tpu.dot_dimension_numbers<[1], [0], [0], [1], [0, 0, 1, 1], [], []>} : vector<8x8xbf16>, vector<8x32xbf16>, vector<8x32xf32> -> vector<8x32xf32>
    %181 = arith.addf %94, %180 : vector<8x32xf32>
    %182 = vector.extract_strided_slice %6 {offsets = [0, 16], sizes = [8, 8], strides = [1, 1]} : vector<8x96xf32> to vector<8x8xf32>
    %183 = vector.extract_strided_slice %6 {offsets = [0, 48], sizes = [8, 8], strides = [1, 1]} : vector<8x96xf32> to vector<8x8xf32>
    %184 = vector.extract_strided_slice %6 {offsets = [0, 80], sizes = [8, 8], strides = [1, 1]} : vector<8x96xf32> to vector<8x8xf32>
    %185 = vector.extract_strided_slice %183 {offsets = [1, 0], sizes = [7, 8], strides = [1, 1]} : vector<8x8xf32> to vector<7x8xf32>
    %186 = vector.extract_strided_slice %183 {offsets = [0, 0], sizes = [1, 8], strides = [1, 1]} : vector<8x8xf32> to vector<1x8xf32>
    %187 = tpu.concatenate %185, %186 in 0 : vector<7x8xf32>, vector<1x8xf32> -> vector<8x8xf32>
    %188 = vector.extract_strided_slice %183 {offsets = [7, 0], sizes = [1, 8], strides = [1, 1]} : vector<8x8xf32> to vector<1x8xf32>
    %189 = vector.extract_strided_slice %183 {offsets = [0, 0], sizes = [7, 8], strides = [1, 1]} : vector<8x8xf32> to vector<7x8xf32>
    %190 = tpu.concatenate %188, %189 in 0 : vector<1x8xf32>, vector<7x8xf32> -> vector<8x8xf32>
    %191 = tpu.iota {dimensions = array<i32: 0>} : vector<8x1xi32>
    %c2_i32_44 = arith.constant 2 : i32
    %c0_i32_45 = arith.constant 0 : i32
    %192 = arith.cmpi eq, %c2_i32_44, %c0_i32_45 : i32
    %c1_i32_46 = arith.constant 1 : i32
    %193 = arith.select %192, %c1_i32_46, %c2_i32_44 : i32
    %194 = vector.broadcast %193 : i32 to vector<8x1xi32>
    %195 = arith.remsi %191, %194 : vector<8x1xi32>
    %c0_i32_47 = arith.constant 0 : i32
    %196 = vector.broadcast %c0_i32_47 : i32 to vector<8x1xi32>
    %197 = arith.cmpi ne, %195, %196 : vector<8x1xi32>
    %c0_i32_48 = arith.constant 0 : i32
    %198 = vector.broadcast %c0_i32_48 : i32 to vector<8x1xi32>
    %199 = arith.cmpi slt, %195, %198 : vector<8x1xi32>
    %c0_i32_49 = arith.constant 0 : i32
    %200 = arith.cmpi slt, %193, %c0_i32_49 : i32
    %201 = vector.broadcast %200 : i1 to vector<8x1xi1>
    %202 = vector.broadcast %201 : vector<8x1xi1> to vector<8x1xi1>
    %203 = arith.xori %199, %202 : vector<8x1xi1>
    %204 = arith.andi %203, %197 : vector<8x1xi1>
    %205 = vector.broadcast %193 : i32 to vector<8x1xi32>
    %206 = arith.addi %195, %205 : vector<8x1xi32>
    %207 = arith.select %204, %206, %195 : vector<8x1xi1>, vector<8x1xi32>
    %c1_i32_50 = arith.constant 1 : i32
    %208 = vector.broadcast %c1_i32_50 : i32 to vector<8x1xi32>
    %209 = arith.addi %207, %208 : vector<8x1xi32>
    %c2_i32_51 = arith.constant 2 : i32
    %210 = vector.broadcast %c2_i32_51 : i32 to vector<8x1xi32>
    %211 = arith.cmpi sge, %209, %210 : vector<8x1xi32>
    %212 = vector.shape_cast %211 : vector<8x1xi1> to vector<8x1xi1>
    %213 = vector.broadcast %212 : vector<8x1xi1> to vector<8x8xi1>
    %214 = arith.select %213, %190, %187 : vector<8x8xi1>, vector<8x8xf32>
    %215 = vector.extract_strided_slice %184 {offsets = [1, 0], sizes = [7, 8], strides = [1, 1]} : vector<8x8xf32> to vector<7x8xf32>
    %216 = vector.extract_strided_slice %184 {offsets = [0, 0], sizes = [1, 8], strides = [1, 1]} : vector<8x8xf32> to vector<1x8xf32>
    %217 = tpu.concatenate %215, %216 in 0 : vector<7x8xf32>, vector<1x8xf32> -> vector<8x8xf32>
    %218 = vector.extract_strided_slice %184 {offsets = [7, 0], sizes = [1, 8], strides = [1, 1]} : vector<8x8xf32> to vector<1x8xf32>
    %219 = vector.extract_strided_slice %184 {offsets = [0, 0], sizes = [7, 8], strides = [1, 1]} : vector<8x8xf32> to vector<7x8xf32>
    %220 = tpu.concatenate %218, %219 in 0 : vector<1x8xf32>, vector<7x8xf32> -> vector<8x8xf32>
    %221 = tpu.iota {dimensions = array<i32: 0>} : vector<8x1xi32>
    %c2_i32_52 = arith.constant 2 : i32
    %c0_i32_53 = arith.constant 0 : i32
    %222 = arith.cmpi eq, %c2_i32_52, %c0_i32_53 : i32
    %c1_i32_54 = arith.constant 1 : i32
    %223 = arith.select %222, %c1_i32_54, %c2_i32_52 : i32
    %224 = vector.broadcast %223 : i32 to vector<8x1xi32>
    %225 = arith.remsi %221, %224 : vector<8x1xi32>
    %c0_i32_55 = arith.constant 0 : i32
    %226 = vector.broadcast %c0_i32_55 : i32 to vector<8x1xi32>
    %227 = arith.cmpi ne, %225, %226 : vector<8x1xi32>
    %c0_i32_56 = arith.constant 0 : i32
    %228 = vector.broadcast %c0_i32_56 : i32 to vector<8x1xi32>
    %229 = arith.cmpi slt, %225, %228 : vector<8x1xi32>
    %c0_i32_57 = arith.constant 0 : i32
    %230 = arith.cmpi slt, %223, %c0_i32_57 : i32
    %231 = vector.broadcast %230 : i1 to vector<8x1xi1>
    %232 = vector.broadcast %231 : vector<8x1xi1> to vector<8x1xi1>
    %233 = arith.xori %229, %232 : vector<8x1xi1>
    %234 = arith.andi %233, %227 : vector<8x1xi1>
    %235 = vector.broadcast %223 : i32 to vector<8x1xi32>
    %236 = arith.addi %225, %235 : vector<8x1xi32>
    %237 = arith.select %234, %236, %225 : vector<8x1xi1>, vector<8x1xi32>
    %c1_i32_58 = arith.constant 1 : i32
    %238 = vector.broadcast %c1_i32_58 : i32 to vector<8x1xi32>
    %239 = arith.addi %237, %238 : vector<8x1xi32>
    %c2_i32_59 = arith.constant 2 : i32
    %240 = vector.broadcast %c2_i32_59 : i32 to vector<8x1xi32>
    %241 = arith.cmpi sge, %239, %240 : vector<8x1xi32>
    %242 = vector.shape_cast %241 : vector<8x1xi1> to vector<8x1xi1>
    %243 = vector.broadcast %242 : vector<8x1xi1> to vector<8x8xi1>
    %244 = arith.select %243, %220, %217 : vector<8x8xi1>, vector<8x8xf32>
    %245 = arith.mulf %182, %183 : vector<8x8xf32>
    %cst_60 = arith.constant dense<0.000000e+00> : vector<8xf32>
    %246 = vector.multi_reduction <add>, %245, %cst_60 [1] : vector<8x8xf32> to vector<8xf32>
    %247 = vector.shape_cast %246 : vector<8xf32> to vector<8x1xf32>
    %248 = arith.mulf %182, %214 : vector<8x8xf32>
    %cst_61 = arith.constant dense<0.000000e+00> : vector<8xf32>
    %249 = vector.multi_reduction <add>, %248, %cst_61 [1] : vector<8x8xf32> to vector<8xf32>
    %250 = vector.shape_cast %249 : vector<8xf32> to vector<8x1xf32>
    %251 = arith.maximumf %247, %250 : vector<8x1xf32>
    %252 = arith.subf %247, %251 : vector<8x1xf32>
    %253 = math.exp %252 : vector<8x1xf32>
    %254 = arith.subf %250, %251 : vector<8x1xf32>
    %255 = math.exp %254 : vector<8x1xf32>
    %256 = arith.addf %253, %255 : vector<8x1xf32>
    %257 = vector.broadcast %253 : vector<8x1xf32> to vector<8x8xf32>
    %258 = arith.mulf %257, %184 : vector<8x8xf32>
    %259 = vector.broadcast %255 : vector<8x1xf32> to vector<8x8xf32>
    %260 = arith.mulf %259, %244 : vector<8x8xf32>
    %261 = arith.addf %258, %260 : vector<8x8xf32>
    %262 = tpu.reciprocal %256 {approx = true} : vector<8x1xf32> -> vector<8x1xf32>
    %263 = vector.broadcast %262 : vector<8x1xf32> to vector<8x8xf32>
    %264 = arith.mulf %261, %263 : vector<8x8xf32>
    %265 = arith.truncf %264 : vector<8x8xf32> to vector<8x8xbf16>
    %c16 = arith.constant 16 : index
    %c0_62 = arith.constant 0 : index
    %266 = vector.load %arg4[%c16, %c0_62] : memref<32x32xbf16, #tpu.memory_space<vmem>>, vector<8x32xbf16>
    %cst_63 = arith.constant dense<0.000000e+00> : vector<8x32xf32>
    %267 = tpu.matmul %265, %266, %cst_63 {dimension_numbers = #tpu.dot_dimension_numbers<[1], [0], [0], [1], [0, 0, 1, 1], [], []>} : vector<8x8xbf16>, vector<8x32xbf16>, vector<8x32xf32> -> vector<8x32xf32>
    %268 = arith.addf %181, %267 : vector<8x32xf32>
    %269 = vector.extract_strided_slice %6 {offsets = [0, 24], sizes = [8, 8], strides = [1, 1]} : vector<8x96xf32> to vector<8x8xf32>
    %270 = vector.extract_strided_slice %6 {offsets = [0, 56], sizes = [8, 8], strides = [1, 1]} : vector<8x96xf32> to vector<8x8xf32>
    %271 = vector.extract_strided_slice %6 {offsets = [0, 88], sizes = [8, 8], strides = [1, 1]} : vector<8x96xf32> to vector<8x8xf32>
    %272 = vector.extract_strided_slice %270 {offsets = [1, 0], sizes = [7, 8], strides = [1, 1]} : vector<8x8xf32> to vector<7x8xf32>
    %273 = vector.extract_strided_slice %270 {offsets = [0, 0], sizes = [1, 8], strides = [1, 1]} : vector<8x8xf32> to vector<1x8xf32>
    %274 = tpu.concatenate %272, %273 in 0 : vector<7x8xf32>, vector<1x8xf32> -> vector<8x8xf32>
    %275 = vector.extract_strided_slice %270 {offsets = [7, 0], sizes = [1, 8], strides = [1, 1]} : vector<8x8xf32> to vector<1x8xf32>
    %276 = vector.extract_strided_slice %270 {offsets = [0, 0], sizes = [7, 8], strides = [1, 1]} : vector<8x8xf32> to vector<7x8xf32>
    %277 = tpu.concatenate %275, %276 in 0 : vector<1x8xf32>, vector<7x8xf32> -> vector<8x8xf32>
    %278 = tpu.iota {dimensions = array<i32: 0>} : vector<8x1xi32>
    %c2_i32_64 = arith.constant 2 : i32
    %c0_i32_65 = arith.constant 0 : i32
    %279 = arith.cmpi eq, %c2_i32_64, %c0_i32_65 : i32
    %c1_i32_66 = arith.constant 1 : i32
    %280 = arith.select %279, %c1_i32_66, %c2_i32_64 : i32
    %281 = vector.broadcast %280 : i32 to vector<8x1xi32>
    %282 = arith.remsi %278, %281 : vector<8x1xi32>
    %c0_i32_67 = arith.constant 0 : i32
    %283 = vector.broadcast %c0_i32_67 : i32 to vector<8x1xi32>
    %284 = arith.cmpi ne, %282, %283 : vector<8x1xi32>
    %c0_i32_68 = arith.constant 0 : i32
    %285 = vector.broadcast %c0_i32_68 : i32 to vector<8x1xi32>
    %286 = arith.cmpi slt, %282, %285 : vector<8x1xi32>
    %c0_i32_69 = arith.constant 0 : i32
    %287 = arith.cmpi slt, %280, %c0_i32_69 : i32
    %288 = vector.broadcast %287 : i1 to vector<8x1xi1>
    %289 = vector.broadcast %288 : vector<8x1xi1> to vector<8x1xi1>
    %290 = arith.xori %286, %289 : vector<8x1xi1>
    %291 = arith.andi %290, %284 : vector<8x1xi1>
    %292 = vector.broadcast %280 : i32 to vector<8x1xi32>
    %293 = arith.addi %282, %292 : vector<8x1xi32>
    %294 = arith.select %291, %293, %282 : vector<8x1xi1>, vector<8x1xi32>
    %c1_i32_70 = arith.constant 1 : i32
    %295 = vector.broadcast %c1_i32_70 : i32 to vector<8x1xi32>
    %296 = arith.addi %294, %295 : vector<8x1xi32>
    %c2_i32_71 = arith.constant 2 : i32
    %297 = vector.broadcast %c2_i32_71 : i32 to vector<8x1xi32>
    %298 = arith.cmpi sge, %296, %297 : vector<8x1xi32>
    %299 = vector.shape_cast %298 : vector<8x1xi1> to vector<8x1xi1>
    %300 = vector.broadcast %299 : vector<8x1xi1> to vector<8x8xi1>
    %301 = arith.select %300, %277, %274 : vector<8x8xi1>, vector<8x8xf32>
    %302 = vector.extract_strided_slice %271 {offsets = [1, 0], sizes = [7, 8], strides = [1, 1]} : vector<8x8xf32> to vector<7x8xf32>
    %303 = vector.extract_strided_slice %271 {offsets = [0, 0], sizes = [1, 8], strides = [1, 1]} : vector<8x8xf32> to vector<1x8xf32>
    %304 = tpu.concatenate %302, %303 in 0 : vector<7x8xf32>, vector<1x8xf32> -> vector<8x8xf32>
    %305 = vector.extract_strided_slice %271 {offsets = [7, 0], sizes = [1, 8], strides = [1, 1]} : vector<8x8xf32> to vector<1x8xf32>
    %306 = vector.extract_strided_slice %271 {offsets = [0, 0], sizes = [7, 8], strides = [1, 1]} : vector<8x8xf32> to vector<7x8xf32>
    %307 = tpu.concatenate %305, %306 in 0 : vector<1x8xf32>, vector<7x8xf32> -> vector<8x8xf32>
    %308 = tpu.iota {dimensions = array<i32: 0>} : vector<8x1xi32>
    %c2_i32_72 = arith.constant 2 : i32
    %c0_i32_73 = arith.constant 0 : i32
    %309 = arith.cmpi eq, %c2_i32_72, %c0_i32_73 : i32
    %c1_i32_74 = arith.constant 1 : i32
    %310 = arith.select %309, %c1_i32_74, %c2_i32_72 : i32
    %311 = vector.broadcast %310 : i32 to vector<8x1xi32>
    %312 = arith.remsi %308, %311 : vector<8x1xi32>
    %c0_i32_75 = arith.constant 0 : i32
    %313 = vector.broadcast %c0_i32_75 : i32 to vector<8x1xi32>
    %314 = arith.cmpi ne, %312, %313 : vector<8x1xi32>
    %c0_i32_76 = arith.constant 0 : i32
    %315 = vector.broadcast %c0_i32_76 : i32 to vector<8x1xi32>
    %316 = arith.cmpi slt, %312, %315 : vector<8x1xi32>
    %c0_i32_77 = arith.constant 0 : i32
    %317 = arith.cmpi slt, %310, %c0_i32_77 : i32
    %318 = vector.broadcast %317 : i1 to vector<8x1xi1>
    %319 = vector.broadcast %318 : vector<8x1xi1> to vector<8x1xi1>
    %320 = arith.xori %316, %319 : vector<8x1xi1>
    %321 = arith.andi %320, %314 : vector<8x1xi1>
    %322 = vector.broadcast %310 : i32 to vector<8x1xi32>
    %323 = arith.addi %312, %322 : vector<8x1xi32>
    %324 = arith.select %321, %323, %312 : vector<8x1xi1>, vector<8x1xi32>
    %c1_i32_78 = arith.constant 1 : i32
    %325 = vector.broadcast %c1_i32_78 : i32 to vector<8x1xi32>
    %326 = arith.addi %324, %325 : vector<8x1xi32>
    %c2_i32_79 = arith.constant 2 : i32
    %327 = vector.broadcast %c2_i32_79 : i32 to vector<8x1xi32>
    %328 = arith.cmpi sge, %326, %327 : vector<8x1xi32>
    %329 = vector.shape_cast %328 : vector<8x1xi1> to vector<8x1xi1>
    %330 = vector.broadcast %329 : vector<8x1xi1> to vector<8x8xi1>
    %331 = arith.select %330, %307, %304 : vector<8x8xi1>, vector<8x8xf32>
    %332 = arith.mulf %269, %270 : vector<8x8xf32>
    %cst_80 = arith.constant dense<0.000000e+00> : vector<8xf32>
    %333 = vector.multi_reduction <add>, %332, %cst_80 [1] : vector<8x8xf32> to vector<8xf32>
    %334 = vector.shape_cast %333 : vector<8xf32> to vector<8x1xf32>
    %335 = arith.mulf %269, %301 : vector<8x8xf32>
    %cst_81 = arith.constant dense<0.000000e+00> : vector<8xf32>
    %336 = vector.multi_reduction <add>, %335, %cst_81 [1] : vector<8x8xf32> to vector<8xf32>
    %337 = vector.shape_cast %336 : vector<8xf32> to vector<8x1xf32>
    %338 = arith.maximumf %334, %337 : vector<8x1xf32>
    %339 = arith.subf %334, %338 : vector<8x1xf32>
    %340 = math.exp %339 : vector<8x1xf32>
    %341 = arith.subf %337, %338 : vector<8x1xf32>
    %342 = math.exp %341 : vector<8x1xf32>
    %343 = arith.addf %340, %342 : vector<8x1xf32>
    %344 = vector.broadcast %340 : vector<8x1xf32> to vector<8x8xf32>
    %345 = arith.mulf %344, %271 : vector<8x8xf32>
    %346 = vector.broadcast %342 : vector<8x1xf32> to vector<8x8xf32>
    %347 = arith.mulf %346, %331 : vector<8x8xf32>
    %348 = arith.addf %345, %347 : vector<8x8xf32>
    %349 = tpu.reciprocal %343 {approx = true} : vector<8x1xf32> -> vector<8x1xf32>
    %350 = vector.broadcast %349 : vector<8x1xf32> to vector<8x8xf32>
    %351 = arith.mulf %348, %350 : vector<8x8xf32>
    %352 = arith.truncf %351 : vector<8x8xf32> to vector<8x8xbf16>
    %c24 = arith.constant 24 : index
    %c0_82 = arith.constant 0 : index
    %353 = vector.load %arg4[%c24, %c0_82] : memref<32x32xbf16, #tpu.memory_space<vmem>>, vector<8x32xbf16>
    %cst_83 = arith.constant dense<0.000000e+00> : vector<8x32xf32>
    %354 = tpu.matmul %352, %353, %cst_83 {dimension_numbers = #tpu.dot_dimension_numbers<[1], [0], [0], [1], [0, 0, 1, 1], [], []>} : vector<8x8xbf16>, vector<8x32xbf16>, vector<8x32xf32> -> vector<8x32xf32>
    %355 = arith.addf %268, %354 : vector<8x32xf32>
    %356 = arith.addf %0, %355 : vector<8x32xf32>
    %c0_84 = arith.constant 0 : index
    %c0_85 = arith.constant 0 : index
    %357 = vector.load %arg5[%c0_84, %c0_85] : memref<1x32xf32, #tpu.memory_space<vmem>>, vector<1x32xf32>
    %358 = vector.broadcast %357 : vector<1x32xf32> to vector<8x32xf32>
    %359 = arith.addf %356, %358 : vector<8x32xf32>
    %c0_86 = arith.constant 0 : index
    %c0_87 = arith.constant 0 : index
    %360 = vector.load %arg6[%c0_86, %c0_87] : memref<1x32xf32, #tpu.memory_space<vmem>>, vector<1x32xf32>
    %c0_88 = arith.constant 0 : index
    %c0_89 = arith.constant 0 : index
    %361 = vector.load %arg7[%c0_88, %c0_89] : memref<1x32xf32, #tpu.memory_space<vmem>>, vector<1x32xf32>
    %cst_90 = arith.constant dense<0.000000e+00> : vector<8xf32>
    %362 = vector.multi_reduction <add>, %359, %cst_90 [1] : vector<8x32xf32> to vector<8xf32>
    %363 = vector.shape_cast %362 : vector<8xf32> to vector<8x1xf32>
    %cst_91 = arith.constant 3.200000e+01 : f32
    %364 = vector.broadcast %cst_91 : f32 to vector<8x1xf32>
    %365 = arith.divf %363, %364 : vector<8x1xf32>
    %366 = vector.broadcast %365 : vector<8x1xf32> to vector<8x32xf32>
    %367 = arith.subf %359, %366 : vector<8x32xf32>
    %368 = arith.mulf %367, %367 : vector<8x32xf32>
    %cst_92 = arith.constant dense<0.000000e+00> : vector<8xf32>
    %369 = vector.multi_reduction <add>, %368, %cst_92 [1] : vector<8x32xf32> to vector<8xf32>
    %370 = vector.shape_cast %369 : vector<8xf32> to vector<8x1xf32>
    %cst_93 = arith.constant 3.200000e+01 : f32
    %371 = vector.broadcast %cst_93 : f32 to vector<8x1xf32>
    %372 = arith.divf %370, %371 : vector<8x1xf32>
    %cst_94 = arith.constant 9.99999974E-6 : f32
    %373 = vector.broadcast %cst_94 : f32 to vector<8x1xf32>
    %374 = arith.addf %372, %373 : vector<8x1xf32>
    %375 = math.rsqrt %374 : vector<8x1xf32>
    %376 = vector.broadcast %375 : vector<8x1xf32> to vector<8x32xf32>
    %377 = arith.mulf %367, %376 : vector<8x32xf32>
    %378 = vector.broadcast %360 : vector<1x32xf32> to vector<8x32xf32>
    %379 = arith.mulf %377, %378 : vector<8x32xf32>
    %380 = vector.broadcast %361 : vector<1x32xf32> to vector<8x32xf32>
    %381 = arith.addf %379, %380 : vector<8x32xf32>
    %c0_95 = arith.constant 0 : index
    %c0_96 = arith.constant 0 : index
    %382 = vector.load %arg8[%c0_95, %c0_96] : memref<8x32xf32, #tpu.memory_space<vmem>>, vector<8x32xf32>
    tpu.vector_store %arg8[%c0_95, %c0_96], %381 {strides = array<i32>} : memref<8x32xf32, #tpu.memory_space<vmem>>, vector<8x32xf32>,
    return
  }
  func.func @transform_0(%arg0: i32) -> (i32, i32) {
    %c0_i32 = arith.constant 0 : i32
    %c0_i32_0 = arith.constant 0 : i32
    return %arg0, %c0_i32 : i32, i32
  }
  func.func @transform_1(%arg0: i32) -> (i32, i32) {
    %c0_i32 = arith.constant 0 : i32
    %c0_i32_0 = arith.constant 0 : i32
    %c0_i32_1 = arith.constant 0 : i32
    return %c0_i32, %c0_i32_0 : i32, i32
  }
  func.func @transform_2(%arg0: i32) -> (i32, i32) {
    %c0_i32 = arith.constant 0 : i32
    %c0_i32_0 = arith.constant 0 : i32
    %c0_i32_1 = arith.constant 0 : i32
    return %c0_i32, %c0_i32_0 : i32, i32
  }
  func.func @transform_3(%arg0: i32) -> (i32, i32) {
    %c0_i32 = arith.constant 0 : i32
    %c0_i32_0 = arith.constant 0 : i32
    %c0_i32_1 = arith.constant 0 : i32
    return %c0_i32, %c0_i32_0 : i32, i32
  }
  func.func @transform_4(%arg0: i32) -> (i32, i32) {
    %c0_i32 = arith.constant 0 : i32
    %c0_i32_0 = arith.constant 0 : i32
    %c0_i32_1 = arith.constant 0 : i32
    return %c0_i32, %c0_i32_0 : i32, i32
  }
  func.func @transform_5(%arg0: i32) -> (i32, i32) {
    %c0_i32 = arith.constant 0 : i32
    %c0_i32_0 = arith.constant 0 : i32
    %c0_i32_1 = arith.constant 0 : i32
    return %c0_i32, %c0_i32_0 : i32, i32
  }
  func.func @transform_6(%arg0: i32) -> (i32, i32) {
    %c0_i32 = arith.constant 0 : i32
    %c0_i32_0 = arith.constant 0 : i32
    %c0_i32_1 = arith.constant 0 : i32
    return %c0_i32, %c0_i32_0 : i32, i32
  }
  func.func @transform_7(%arg0: i32) -> (i32, i32) {
    %c0_i32 = arith.constant 0 : i32
    %c0_i32_0 = arith.constant 0 : i32
    return %arg0, %c0_i32 : i32, i32
  }
}

module attributes {stable_mosaic.version = 11 : i64} {
  func.func @matmul_bias_kernel(%arg0: i32, %arg1: memref<8x192xf32, #tpu.memory_space<vmem>>, %arg2: memref<192x32xbf16, #tpu.memory_space<vmem>>, %arg3: memref<1x32xf32, #tpu.memory_space<vmem>>, %arg4: memref<8x32xf32, #tpu.memory_space<vmem>>) attributes {dimension_semantics = [#tpu.dimension_semantics<parallel>], iteration_bounds = array<i64: 1>, scalar_prefetch = 0 : i64, scratch_operands = 0 : i64, tpu.core_type = #tpu.core_type<tc>, window_params = [{transform_indices = @transform_0, window_bounds = array<i64: 8, 192>}, {pipeline_mode = #tpu.pipeline_mode<synchronous>, transform_indices = @transform_1, window_bounds = array<i64: 192, 32>}, {pipeline_mode = #tpu.pipeline_mode<synchronous>, transform_indices = @transform_2, window_bounds = array<i64: 1, 32>}, {transform_indices = @transform_3, window_bounds = array<i64: 8, 32>}]} {
    %c0 = arith.constant 0 : index
    %c0_0 = arith.constant 0 : index
    %0 = vector.load %arg1[%c0, %c0_0] : memref<8x192xf32, #tpu.memory_space<vmem>>, vector<8x192xf32>
    %1 = arith.truncf %0 : vector<8x192xf32> to vector<8x192xbf16>
    %c0_1 = arith.constant 0 : index
    %c0_2 = arith.constant 0 : index
    %2 = vector.load %arg2[%c0_1, %c0_2] : memref<192x32xbf16, #tpu.memory_space<vmem>>, vector<192x32xbf16>
    %cst = arith.constant dense<0.000000e+00> : vector<8x32xf32>
    %3 = tpu.matmul %1, %2, %cst {dimension_numbers = #tpu.dot_dimension_numbers<[1], [0], [0], [1], [0, 0, 1, 1], [], []>} : vector<8x192xbf16>, vector<192x32xbf16>, vector<8x32xf32> -> vector<8x32xf32>
    %c0_3 = arith.constant 0 : index
    %c0_4 = arith.constant 0 : index
    %4 = vector.load %arg3[%c0_3, %c0_4] : memref<1x32xf32, #tpu.memory_space<vmem>>, vector<1x32xf32>
    %5 = vector.broadcast %4 : vector<1x32xf32> to vector<8x32xf32>
    %6 = arith.addf %3, %5 : vector<8x32xf32>
    %c0_5 = arith.constant 0 : index
    %c0_6 = arith.constant 0 : index
    %7 = vector.load %arg4[%c0_5, %c0_6] : memref<8x32xf32, #tpu.memory_space<vmem>>, vector<8x32xf32>
    tpu.vector_store %arg4[%c0_5, %c0_6], %6 {strides = array<i32>} : memref<8x32xf32, #tpu.memory_space<vmem>>, vector<8x32xf32>,
    return
  }
  func.func @transform_0(%arg0: i32) -> (i32, i32) {
    %c0_i32 = arith.constant 0 : i32
    %c0_i32_0 = arith.constant 0 : i32
    return %arg0, %c0_i32 : i32, i32
  }
  func.func @transform_1(%arg0: i32) -> (i32, i32) {
    %c0_i32 = arith.constant 0 : i32
    %c0_i32_0 = arith.constant 0 : i32
    %c0_i32_1 = arith.constant 0 : i32
    return %c0_i32, %c0_i32_0 : i32, i32
  }
  func.func @transform_2(%arg0: i32) -> (i32, i32) {
    %c0_i32 = arith.constant 0 : i32
    %c0_i32_0 = arith.constant 0 : i32
    %c0_i32_1 = arith.constant 0 : i32
    return %c0_i32, %c0_i32_0 : i32, i32
  }
  func.func @transform_3(%arg0: i32) -> (i32, i32) {
    %c0_i32 = arith.constant 0 : i32
    %c0_i32_0 = arith.constant 0 : i32
    return %arg0, %c0_i32 : i32, i32
  }
}

module attributes {stable_mosaic.version = 11 : i64} {
  func.func @ffn_ln_kernel(%arg0: i32, %arg1: i32, %arg2: memref<8x32xf32, #tpu.memory_space<vmem>>, %arg3: memref<32x128xbf16, #tpu.memory_space<vmem>>, %arg4: memref<1x128xf32, #tpu.memory_space<vmem>>, %arg5: memref<128x32xbf16, #tpu.memory_space<vmem>>, %arg6: memref<1x32xf32, #tpu.memory_space<vmem>>, %arg7: memref<1x32xf32, #tpu.memory_space<vmem>>, %arg8: memref<1x32xf32, #tpu.memory_space<vmem>>, %arg9: memref<8x32xf32, #tpu.memory_space<vmem>>, %arg10: memref<8x32xf32, #tpu.memory_space<vmem>>) attributes {dimension_semantics = [#tpu.dimension_semantics<parallel>, #tpu.dimension_semantics<arbitrary>], iteration_bounds = array<i64: 2, 1>, scalar_prefetch = 0 : i64, scratch_operands = 1 : i64, tpu.core_type = #tpu.core_type<tc>, window_params = [{transform_indices = @transform_0, window_bounds = array<i64: 8, 32>}, {transform_indices = @transform_1, window_bounds = array<i64: 32, 128>}, {transform_indices = @transform_2, window_bounds = array<i64: 1, 128>}, {transform_indices = @transform_3, window_bounds = array<i64: 128, 32>}, {pipeline_mode = #tpu.pipeline_mode<synchronous>, transform_indices = @transform_4, window_bounds = array<i64: 1, 32>}, {pipeline_mode = #tpu.pipeline_mode<synchronous>, transform_indices = @transform_5, window_bounds = array<i64: 1, 32>}, {pipeline_mode = #tpu.pipeline_mode<synchronous>, transform_indices = @transform_6, window_bounds = array<i64: 1, 32>}, {transform_indices = @transform_7, window_bounds = array<i64: 8, 32>}]} {
    %c0_i32 = arith.constant 0 : i32
    %0 = arith.cmpi eq, %arg1, %c0_i32 : i32
    %1 = arith.extui %0 : i1 to i32
    %c0_i32_0 = arith.constant 0 : i32
    %2 = arith.cmpi ne, %1, %c0_i32_0 : i32
    scf.if %2 {
      %cst_16 = arith.constant 0.000000e+00 : f32
      %21 = vector.broadcast %cst_16 : f32 to vector<8x32xf32>
      %c0_17 = arith.constant 0 : index
      %c0_18 = arith.constant 0 : index
      %22 = vector.load %arg10[%c0_17, %c0_18] : memref<8x32xf32, #tpu.memory_space<vmem>>, vector<8x32xf32>
      tpu.vector_store %arg10[%c0_17, %c0_18], %21 {strides = array<i32>} : memref<8x32xf32, #tpu.memory_space<vmem>>, vector<8x32xf32>,
    } else {
    }
    %c0 = arith.constant 0 : index
    %c0_1 = arith.constant 0 : index
    %3 = vector.load %arg2[%c0, %c0_1] : memref<8x32xf32, #tpu.memory_space<vmem>>, vector<8x32xf32>
    %4 = arith.truncf %3 : vector<8x32xf32> to vector<8x32xbf16>
    %c0_2 = arith.constant 0 : index
    %c0_3 = arith.constant 0 : index
    %5 = vector.load %arg3[%c0_2, %c0_3] : memref<32x128xbf16, #tpu.memory_space<vmem>>, vector<32x128xbf16>
    %cst = arith.constant dense<0.000000e+00> : vector<8x128xf32>
    %6 = tpu.matmul %4, %5, %cst {dimension_numbers = #tpu.dot_dimension_numbers<[1], [0], [0], [1], [0, 0, 1, 1], [], []>} : vector<8x32xbf16>, vector<32x128xbf16>, vector<8x128xf32> -> vector<8x128xf32>
    %c0_4 = arith.constant 0 : index
    %c0_5 = arith.constant 0 : index
    %7 = vector.load %arg4[%c0_4, %c0_5] : memref<1x128xf32, #tpu.memory_space<vmem>>, vector<1x128xf32>
    %8 = vector.broadcast %7 : vector<1x128xf32> to vector<8x128xf32>
    %9 = arith.addf %6, %8 : vector<8x128xf32>
    %cst_6 = arith.constant 0.000000e+00 : f32
    %10 = vector.broadcast %cst_6 : f32 to vector<8x128xf32>
    %11 = arith.maximumf %9, %10 : vector<8x128xf32>
    %12 = arith.truncf %11 : vector<8x128xf32> to vector<8x128xbf16>
    %c0_7 = arith.constant 0 : index
    %c0_8 = arith.constant 0 : index
    %13 = vector.load %arg10[%c0_7, %c0_8] : memref<8x32xf32, #tpu.memory_space<vmem>>, vector<8x32xf32>
    %c0_9 = arith.constant 0 : index
    %c0_10 = arith.constant 0 : index
    %14 = vector.load %arg5[%c0_9, %c0_10] : memref<128x32xbf16, #tpu.memory_space<vmem>>, vector<128x32xbf16>
    %cst_11 = arith.constant dense<0.000000e+00> : vector<8x32xf32>
    %15 = tpu.matmul %12, %14, %cst_11 {dimension_numbers = #tpu.dot_dimension_numbers<[1], [0], [0], [1], [0, 0, 1, 1], [], []>} : vector<8x128xbf16>, vector<128x32xbf16>, vector<8x32xf32> -> vector<8x32xf32>
    %16 = arith.addf %13, %15 : vector<8x32xf32>
    %c0_12 = arith.constant 0 : index
    %c0_13 = arith.constant 0 : index
    %17 = vector.load %arg10[%c0_12, %c0_13] : memref<8x32xf32, #tpu.memory_space<vmem>>, vector<8x32xf32>
    tpu.vector_store %arg10[%c0_12, %c0_13], %16 {strides = array<i32>} : memref<8x32xf32, #tpu.memory_space<vmem>>, vector<8x32xf32>,
    %c0_i32_14 = arith.constant 0 : i32
    %18 = arith.cmpi eq, %arg1, %c0_i32_14 : i32
    %19 = arith.extui %18 : i1 to i32
    %c0_i32_15 = arith.constant 0 : i32
    %20 = arith.cmpi ne, %19, %c0_i32_15 : i32
    scf.if %20 {
      %c0_16 = arith.constant 0 : index
      %c0_17 = arith.constant 0 : index
      %21 = vector.load %arg2[%c0_16, %c0_17] : memref<8x32xf32, #tpu.memory_space<vmem>>, vector<8x32xf32>
      %c0_18 = arith.constant 0 : index
      %c0_19 = arith.constant 0 : index
      %22 = vector.load %arg10[%c0_18, %c0_19] : memref<8x32xf32, #tpu.memory_space<vmem>>, vector<8x32xf32>
      %23 = arith.addf %21, %22 : vector<8x32xf32>
      %c0_20 = arith.constant 0 : index
      %c0_21 = arith.constant 0 : index
      %24 = vector.load %arg6[%c0_20, %c0_21] : memref<1x32xf32, #tpu.memory_space<vmem>>, vector<1x32xf32>
      %25 = vector.broadcast %24 : vector<1x32xf32> to vector<8x32xf32>
      %26 = arith.addf %23, %25 : vector<8x32xf32>
      %c0_22 = arith.constant 0 : index
      %c0_23 = arith.constant 0 : index
      %27 = vector.load %arg7[%c0_22, %c0_23] : memref<1x32xf32, #tpu.memory_space<vmem>>, vector<1x32xf32>
      %c0_24 = arith.constant 0 : index
      %c0_25 = arith.constant 0 : index
      %28 = vector.load %arg8[%c0_24, %c0_25] : memref<1x32xf32, #tpu.memory_space<vmem>>, vector<1x32xf32>
      %cst_26 = arith.constant dense<0.000000e+00> : vector<8xf32>
      %29 = vector.multi_reduction <add>, %26, %cst_26 [1] : vector<8x32xf32> to vector<8xf32>
      %30 = vector.shape_cast %29 : vector<8xf32> to vector<8x1xf32>
      %cst_27 = arith.constant 3.200000e+01 : f32
      %31 = vector.broadcast %cst_27 : f32 to vector<8x1xf32>
      %32 = arith.divf %30, %31 : vector<8x1xf32>
      %33 = vector.broadcast %32 : vector<8x1xf32> to vector<8x32xf32>
      %34 = arith.subf %26, %33 : vector<8x32xf32>
      %35 = arith.mulf %34, %34 : vector<8x32xf32>
      %cst_28 = arith.constant dense<0.000000e+00> : vector<8xf32>
      %36 = vector.multi_reduction <add>, %35, %cst_28 [1] : vector<8x32xf32> to vector<8xf32>
      %37 = vector.shape_cast %36 : vector<8xf32> to vector<8x1xf32>
      %cst_29 = arith.constant 3.200000e+01 : f32
      %38 = vector.broadcast %cst_29 : f32 to vector<8x1xf32>
      %39 = arith.divf %37, %38 : vector<8x1xf32>
      %cst_30 = arith.constant 9.99999974E-6 : f32
      %40 = vector.broadcast %cst_30 : f32 to vector<8x1xf32>
      %41 = arith.addf %39, %40 : vector<8x1xf32>
      %42 = math.rsqrt %41 : vector<8x1xf32>
      %43 = vector.broadcast %42 : vector<8x1xf32> to vector<8x32xf32>
      %44 = arith.mulf %34, %43 : vector<8x32xf32>
      %45 = vector.broadcast %27 : vector<1x32xf32> to vector<8x32xf32>
      %46 = arith.mulf %44, %45 : vector<8x32xf32>
      %47 = vector.broadcast %28 : vector<1x32xf32> to vector<8x32xf32>
      %48 = arith.addf %46, %47 : vector<8x32xf32>
      %c0_31 = arith.constant 0 : index
      %c0_32 = arith.constant 0 : index
      %49 = vector.load %arg9[%c0_31, %c0_32] : memref<8x32xf32, #tpu.memory_space<vmem>>, vector<8x32xf32>
      tpu.vector_store %arg9[%c0_31, %c0_32], %48 {strides = array<i32>} : memref<8x32xf32, #tpu.memory_space<vmem>>, vector<8x32xf32>,
    } else {
    }
    return
  }
  func.func @transform_0(%arg0: i32, %arg1: i32) -> (i32, i32) {
    %c0_i32 = arith.constant 0 : i32
    %c0_i32_0 = arith.constant 0 : i32
    return %arg0, %c0_i32 : i32, i32
  }
  func.func @transform_1(%arg0: i32, %arg1: i32) -> (i32, i32) {
    %c0_i32 = arith.constant 0 : i32
    %c0_i32_0 = arith.constant 0 : i32
    return %c0_i32, %arg1 : i32, i32
  }
  func.func @transform_2(%arg0: i32, %arg1: i32) -> (i32, i32) {
    %c0_i32 = arith.constant 0 : i32
    %c0_i32_0 = arith.constant 0 : i32
    return %c0_i32, %arg1 : i32, i32
  }
  func.func @transform_3(%arg0: i32, %arg1: i32) -> (i32, i32) {
    %c0_i32 = arith.constant 0 : i32
    %c0_i32_0 = arith.constant 0 : i32
    return %arg1, %c0_i32 : i32, i32
  }
  func.func @transform_4(%arg0: i32, %arg1: i32) -> (i32, i32) {
    %c0_i32 = arith.constant 0 : i32
    %c0_i32_0 = arith.constant 0 : i32
    %c0_i32_1 = arith.constant 0 : i32
    return %c0_i32, %c0_i32_0 : i32, i32
  }
  func.func @transform_5(%arg0: i32, %arg1: i32) -> (i32, i32) {
    %c0_i32 = arith.constant 0 : i32
    %c0_i32_0 = arith.constant 0 : i32
    %c0_i32_1 = arith.constant 0 : i32
    return %c0_i32, %c0_i32_0 : i32, i32
  }
  func.func @transform_6(%arg0: i32, %arg1: i32) -> (i32, i32) {
    %c0_i32 = arith.constant 0 : i32
    %c0_i32_0 = arith.constant 0 : i32
    %c0_i32_1 = arith.constant 0 : i32
    return %c0_i32, %c0_i32_0 : i32, i32
  }
  func.func @transform_7(%arg0: i32, %arg1: i32) -> (i32, i32) {
    %c0_i32 = arith.constant 0 : i32
    %c0_i32_0 = arith.constant 0 : i32
    return %arg0, %c0_i32 : i32, i32
  }
}

</mosaic_0001>

<llo_original>
// kernel: vit_forward_pallas.5
$region0: #{vit_forward_pallas.5}
  #allocation0 [shape = 'u32[]', space=smem, size = 0x4, offset = 0x4, fixed_abs, tag = 'smem constant byte address 0x4 - core index']
  #allocation1 [shape = 'u32[72,128]{1,0:T(1,128)}', space=vmem, size = 0x9000, scoped, tag = 'internal scratch']
  %s0 = inlined_call_operand.vmem [shape: f32[8,192], index: 0, kind: input, shape index: {}]
  %s1 = inlined_call_operand.vmem [shape: bf16[192,32], index: 1, kind: input, shape index: {}]
  %s2 = inlined_call_operand.vmem [shape: f32[1,32], index: 2, kind: input, shape index: {}]
  %s3 = inlined_call_operand.vmem [shape: f32[8,32], index: 3, kind: output, shape index: {}]
  %s4 = sld [smem:[#allocation0]]
  $region22: #{vit_forward_pallas.5} parent=0
    _
  %s6 = ssub.s32 1, %s4
  %s7 = scalar_select 0, %s6, %s4
  // Predicated region
  $region2: #{vit_forward_pallas.5} parent=0 // pred_check
    _
  $region3: #{vit_forward_pallas.5} parent=0 // pred_check_branch
    %9 = sbr.rel (0) target = $region5
  $region4: #{vit_forward_pallas.5} parent=0 // pred_region
    _
  $region5: #{vit_forward_pallas.5} parent=0 // pred_fallthru
    _
  // Predicated region
  $region6: #{vit_forward_pallas.5} parent=0 // pred_check
    _
  $region7: #{vit_forward_pallas.5} parent=0 // pred_check_branch
    %11 = sbr.rel (0) target = $region9
  $region8: #{vit_forward_pallas.5} parent=0 // pred_region
    _
  $region9: #{vit_forward_pallas.5} parent=0 // pred_fallthru
    _
  // Predicated region
  $region10: #{vit_forward_pallas.5} parent=0 // pred_check
    _
  $region11: #{vit_forward_pallas.5} parent=0 // pred_check_branch
    %13 = sbr.rel (0) target = $region13
  $region12: #{vit_forward_pallas.5} parent=0 // pred_region
    _
  $region13: #{vit_forward_pallas.5} parent=0 // pred_fallthru
    _
  %v15 = vld [vmem:[%s0] sm:$0xff]
  %v16 = vld [vmem:[%s0 + $0x8] sm:$0xff]
  %v17 = vpack.c.bf16 %v15, %v15
  %v18 = vpack.c.bf16 %v16, %v16
  %v19 = vld [vmem:[%s1] sm:$0xf]
  %v20 = vld [vmem:[%s1 + $0x4] sm:$0xf]
  %v21 = vld [vmem:[%s1 + $0x8] sm:$0xf]
  %v22 = vld [vmem:[%s1 + $0xc] sm:$0xf]
  %v23 = vld [vmem:[%s1 + $0x10] sm:$0xf]
  %v24 = vld [vmem:[%s1 + $0x14] sm:$0xf]
  %v25 = vld [vmem:[%s1 + $0x18] sm:$0xf]
  %v26 = vld [vmem:[%s1 + $0x1c] sm:$0xf]
  %v27 = vld [vmem:[%s1 + $0x20] sm:$0xf]
  %v28 = vld [vmem:[%s1 + $0x24] sm:$0xf]
  %v29 = vld [vmem:[%s1 + $0x28] sm:$0xf]
  %v30 = vld [vmem:[%s1 + $0x2c] sm:$0xf]
  %v31 = vld [vmem:[%s1 + $0x30] sm:$0xf]
  %v32 = vld [vmem:[%s1 + $0x34] sm:$0xf]
  %v33 = vld [vmem:[%s1 + $0x38] sm:$0xf]
  %v34 = vld [vmem:[%s1 + $0x3c] sm:$0xf]
  %v35 = vld [vmem:[%s1 + $0x40] sm:$0xf]
  %v36 = vld [vmem:[%s1 + $0x44] sm:$0xf]
  %v37 = vld [vmem:[%s1 + $0x48] sm:$0xf]
  %v38 = vld [vmem:[%s1 + $0x4c] sm:$0xf]
  %v39 = vld [vmem:[%s1 + $0x50] sm:$0xf]
  %v40 = vld [vmem:[%s1 + $0x54] sm:$0xf]
  %v41 = vld [vmem:[%s1 + $0x58] sm:$0xf]
  %v42 = vld [vmem:[%s1 + $0x5c] sm:$0xf]
  %v43 = vld [vmem:[%s2] sm:$0x1]
  %v45 = vperm.slane %v43, 0
  %v71 = vunpack.c.l.b16 %v19
  %v72 = vunpack.c.l.b16 %v20
  %v73 = vunpack.c.l.b16 %v21
  %v74 = vunpack.c.l.b16 %v22
  %v75 = vunpack.c.l.b16 %v23
  %v76 = vunpack.c.l.b16 %v24
  %v77 = vunpack.c.l.b16 %v25
  %v78 = vunpack.c.l.b16 %v26
  %v79 = vunpack.c.l.b16 %v27
  %v80 = vunpack.c.l.b16 %v28
  %v81 = vunpack.c.l.b16 %v29
  %v82 = vunpack.c.l.b16 %v30
  %v83 = vunpack.c.l.b16 %v31
  %v84 = vunpack.c.l.b16 %v32
  %v85 = vunpack.c.l.b16 %v33
  %v86 = vunpack.c.l.b16 %v34
  %v87 = vunpack.c.l.b16 %v35
  %v88 = vunpack.c.l.b16 %v36
  %v89 = vunpack.c.l.b16 %v37
  %v90 = vunpack.c.l.b16 %v38
  %v91 = vunpack.c.l.b16 %v39
  %v92 = vunpack.c.l.b16 %v40
  %v93 = vunpack.c.l.b16 %v41
  %v94 = vunpack.c.l.b16 %v42
  %v95 = vpack.c.b16 %v72, %v71
  %v96 = vpack.c.b16 %v74, %v73
  %v97 = vpack.c.b16 %v76, %v75
  %v98 = vpack.c.b16 %v78, %v77
  %v99 = vpack.c.b16 %v80, %v79
  %v100 = vpack.c.b16 %v82, %v81
  %v101 = vpack.c.b16 %v84, %v83
  %v102 = vpack.c.b16 %v86, %v85
  %v103 = vpack.c.b16 %v88, %v87
  %v104 = vpack.c.b16 %v90, %v89
  %v105 = vpack.c.b16 %v92, %v91
  %v106 = vpack.c.b16 %v94, %v93
  %vm119 = vcmask 523264
  %v121 = vsel %vm119, %v18, 0
  %123 = vmatpush.bf16.msra.mxu0 %v102
  %124 = vmatpush.bf16.msra.mxu0 %v101
  %125 = vmatpush.bf16.msra.mxu0 %v100
  %126 = vmatpush.bf16.msra.mxu0 %v99
  %127 = vmatpush.bf16.msra.mxu0 %v98
  %128 = vmatpush.bf16.msra.mxu0 %v97
  %129 = vmatpush.bf16.msra.mxu0 %v96
  %130 = vmatpush.bf16.msra.mxu0 %v95
  %131 = vmatmul.bf16.gmra.mxu0 %v17
  %v132 = vpop.f32.mrf.mxu0
  %v133 = vadd.f32 %v45, %v132
  %v134 = vpop.f32.mrf.mxu0
  %135 = vdwg.mxu0
  %136 = vmatpush.bf16.msra.mxu0 0
  %137 = vmatpush.bf16.msra.mxu0 0
  %138 = vmatpush.bf16.msra.mxu0 0
  %139 = vmatpush.bf16.msra.mxu0 0
  %140 = vmatpush.bf16.msra.mxu0 %v106
  %141 = vmatpush.bf16.msra.mxu0 %v105
  %142 = vmatpush.bf16.msra.mxu0 %v104
  %143 = vmatpush.bf16.msra.mxu0 %v103
  %144 = vmatmul.bf16.gmra.mxu0 %v121
  %v145 = vpop.f32.mrf.mxu0
  %v146 = vadd.f32 %v133, %v145
  %v147 = vpop.f32.mrf.mxu0
  %148 = vdwg.mxu0
  %vm149 = vcmask 261120
  %150 = vst.msk [vmem:[%s3] sm:$0xff] %vm149, %v146
  // Predicated region
  $region14: #{vit_forward_pallas.5} parent=0 // pred_check
    _
  $region15: #{vit_forward_pallas.5} parent=0 // pred_check_branch
    %152 = sbr.rel (0) target = $region17
  $region16: #{vit_forward_pallas.5} parent=0 // pred_region
    _
  $region17: #{vit_forward_pallas.5} parent=0 // pred_fallthru
    _
  // Predicated region
  $region18: #{vit_forward_pallas.5} parent=0 // pred_check
    _
  $region19: #{vit_forward_pallas.5} parent=0 // pred_check_branch
    %154 = sbr.rel (0) target = $region21
  $region20: #{vit_forward_pallas.5} parent=0 // pred_region
    _
  $region21: #{vit_forward_pallas.5} parent=0 // pred_fallthru
    _

// kernel: vit_forward_pallas.6
$region0: #{vit_forward_pallas.6}
  #allocation0 [shape = 'u32[]', space=smem, size = 0x4, offset = 0x4, fixed_abs, tag = 'smem constant byte address 0x4 - core index']
  #allocation1 [shape = 'u32[72,128]{1,0:T(1,128)}', space=vmem, size = 0x9000, scoped, tag = 'internal scratch']
  %s0 = inlined_call_operand.vmem [shape: f32[16,32], index: 0, kind: input, shape index: {}, may-alias: {0,7}]
  %s1 = inlined_call_operand.vmem [shape: bf16[32,96], index: 1, kind: input, shape index: {}]
  %s2 = inlined_call_operand.vmem [shape: f32[1,96], index: 2, kind: input, shape index: {}]
  %s3 = inlined_call_operand.vmem [shape: bf16[32,32], index: 3, kind: input, shape index: {}]
  %s4 = inlined_call_operand.vmem [shape: f32[1,32], index: 4, kind: input, shape index: {}]
  %s5 = inlined_call_operand.vmem [shape: f32[1,32], index: 5, kind: input, shape index: {}]
  %s6 = inlined_call_operand.vmem [shape: f32[1,32], index: 6, kind: input, shape index: {}]
  %s7 = inlined_call_operand.vmem [shape: f32[16,32], index: 7, kind: output, shape index: {}, may-alias: {0,7}]
  %s8 = sld [smem:[#allocation0]]
  $region61: #{vit_forward_pallas.6} parent=0
    _
  %s10 = ssub.s32 1, %s8
  %s11 = scalar_select 0, %s10, %s8
  loop: start=0, step=1, limit=4
  $region2: #{vit_forward_pallas.6} parent=0 // loop_pre_header
    _
  $region3: #{vit_forward_pallas.6} parent=0 // loop_header
    %s13 = sphi 0, %s17
    %p14 = scmp.ge.s32.totalorder %s13, 4
    %s23 = sphi 0, %s25
    %s26 = sphi 0, %s23
    %s27 = sphi 0, %s26
    %s43 = sphi 0, %s27
    %s47 = sphi 0, %s47
    %s49 = sphi 0, %s47
    %s50 = sphi 0, %s49
    %s64 = sphi 0, %s50
    %s68 = sphi 0, %s68
    %s70 = sphi 0, %s68
    %s71 = sphi 0, %s70
    %s85 = sphi 0, %s71
    %s89 = sphi 0, %s89
    %s91 = sphi 0, %s89
    %s92 = sphi 0, %s91
    %s106 = sphi 0, %s92
    %s110 = sphi 0, %s110
    %s112 = sphi 0, %s110
    %s113 = sphi 0, %s112
    %s127 = sphi 0, %s113
    %s131 = sphi 0, %s131
    %s133 = sphi 0, %s131
    %s134 = sphi 0, %s133
    %s148 = sphi 0, %s134
    %s152 = sphi 0, %s152
    %s154 = sphi 0, %s152
    %s155 = sphi 0, %s154
    %s169 = sphi 0, %s155
    %s175 = sphi 0, %s177
    %s178 = sphi 0, %s175
    %s179 = sphi 0, %s178
    %s195 = sphi 0, %s179
  $region4: #{vit_forward_pallas.6} parent=0 // loop_header_branch
    %16 = sbr.rel (%p14) target = $region8
  $region5: #{vit_forward_pallas.6} parent=0 // loop_body
    %s18 = ssub.s32 %s13, 1
    %s19 = ssub.s32 %s13, 2
    %s20 = sadd.s32 %s13, 1
    %s21 = ssub.s32 %s13, %s20
    %p22 = scmp.eq.s32.totalorder %s21, 0
    %s24 = sadd.s32 %s23, 1
    %s25 = scalar_select %p22, %s23, %s24
    %p28 = pneg %p22
    %p29 = scmp.eq.s32.totalorder %s13, 1
    %p30 = por %p28, %p29
    %p31 = scmp.ne.s32.totalorder %s23, %s26
    %p32 = scmp.eq.s32.totalorder %s13, 0
    %p33 = por %p31, %p32
    %p34 = scmp.ne.s32.totalorder %s23, %s26
    %p35 = scmp.eq.s32.totalorder %s18, 1
    %p36 = por %p34, %p35
    %p37 = scmp.ne.s32.totalorder %s26, %s27
    %p38 = scmp.eq.s32.totalorder %s18, 0
    %p39 = por %p37, %p38
    %p40 = scmp.ne.s32.totalorder %s26, %s27
    %p41 = scmp.eq.s32.totalorder %s19, 1
    %p42 = por %p40, %p41
    %p44 = scmp.ne.s32.totalorder %s27, %s43
    %p45 = scmp.eq.s32.totalorder %s19, 0
    %p46 = por %p44, %p45
    %s48 = sadd.s32 %s47, 1
    %p51 = scmp.eq.s32.totalorder %s13, 1
    %p52 = scmp.ne.s32.totalorder %s47, %s49
    %p53 = scmp.eq.s32.totalorder %s13, 0
    %p54 = por %p52, %p53
    %p55 = scmp.ne.s32.totalorder %s47, %s49
    %p56 = scmp.eq.s32.totalorder %s18, 1
    %p57 = por %p55, %p56
    %p58 = scmp.ne.s32.totalorder %s49, %s50
    %p59 = scmp.eq.s32.totalorder %s18, 0
    %p60 = por %p58, %p59
    %p61 = scmp.ne.s32.totalorder %s49, %s50
    %p62 = scmp.eq.s32.totalorder %s19, 1
    %p63 = por %p61, %p62
    %p65 = scmp.ne.s32.totalorder %s50, %s64
    %p66 = scmp.eq.s32.totalorder %s19, 0
    %p67 = por %p65, %p66
    %s69 = sadd.s32 %s68, 1
    %p72 = scmp.eq.s32.totalorder %s13, 1
    %p73 = scmp.ne.s32.totalorder %s68, %s70
    %p74 = scmp.eq.s32.totalorder %s13, 0
    %p75 = por %p73, %p74
    %p76 = scmp.ne.s32.totalorder %s68, %s70
    %p77 = scmp.eq.s32.totalorder %s18, 1
    %p78 = por %p76, %p77
    %p79 = scmp.ne.s32.totalorder %s70, %s71
    %p80 = scmp.eq.s32.totalorder %s18, 0
    %p81 = por %p79, %p80
    %p82 = scmp.ne.s32.totalorder %s70, %s71
    %p83 = scmp.eq.s32.totalorder %s19, 1
    %p84 = por %p82, %p83
    %p86 = scmp.ne.s32.totalorder %s71, %s85
    %p87 = scmp.eq.s32.totalorder %s19, 0
    %p88 = por %p86, %p87
    %s90 = sadd.s32 %s89, 1
    %p93 = scmp.eq.s32.totalorder %s13, 1
    %p94 = scmp.ne.s32.totalorder %s89, %s91
    %p95 = scmp.eq.s32.totalorder %s13, 0
    %p96 = por %p94, %p95
    %p97 = scmp.ne.s32.totalorder %s89, %s91
    %p98 = scmp.eq.s32.totalorder %s18, 1
    %p99 = por %p97, %p98
    %p100 = scmp.ne.s32.totalorder %s91, %s92
    %p101 = scmp.eq.s32.totalorder %s18, 0
    %p102 = por %p100, %p101
    %p103 = scmp.ne.s32.totalorder %s91, %s92
    %p104 = scmp.eq.s32.totalorder %s19, 1
    %p105 = por %p103, %p104
    %p107 = scmp.ne.s32.totalorder %s92, %s106
    %p108 = scmp.eq.s32.totalorder %s19, 0
    %p109 = por %p107, %p108
    %s111 = sadd.s32 %s110, 1
    %p114 = scmp.eq.s32.totalorder %s13, 1
    %p115 = scmp.ne.s32.totalorder %s110, %s112
    %p116 = scmp.eq.s32.totalorder %s13, 0
    %p117 = por %p115, %p116
    %p118 = scmp.ne.s32.totalorder %s110, %s112
    %p119 = scmp.eq.s32.totalorder %s18, 1
    %p120 = por %p118, %p119
    %p121 = scmp.ne.s32.totalorder %s112, %s113
    %p122 = scmp.eq.s32.totalorder %s18, 0
    %p123 = por %p121, %p122
    %p124 = scmp.ne.s32.totalorder %s112, %s113
    %p125 = scmp.eq.s32.totalorder %s19, 1
    %p126 = por %p124, %p125
    %p128 = scmp.ne.s32.totalorder %s113, %s127
    %p129 = scmp.eq.s32.totalorder %s19, 0
    %p130 = por %p128, %p129
    %s132 = sadd.s32 %s131, 1
    %p135 = scmp.eq.s32.totalorder %s13, 1
    %p136 = scmp.ne.s32.totalorder %s131, %s133
    %p137 = scmp.eq.s32.totalorder %s13, 0
    %p138 = por %p136, %p137
    %p139 = scmp.ne.s32.totalorder %s131, %s133
    %p140 = scmp.eq.s32.totalorder %s18, 1
    %p141 = por %p139, %p140
    %p142 = scmp.ne.s32.totalorder %s133, %s134
    %p143 = scmp.eq.s32.totalorder %s18, 0
    %p144 = por %p142, %p143
    %p145 = scmp.ne.s32.totalorder %s133, %s134
    %p146 = scmp.eq.s32.totalorder %s19, 1
    %p147 = por %p145, %p146
    %p149 = scmp.ne.s32.totalorder %s134, %s148
    %p150 = scmp.eq.s32.totalorder %s19, 0
    %p151 = por %p149, %p150
    %s153 = sadd.s32 %s152, 1
    %p156 = scmp.eq.s32.totalorder %s13, 1
    %p157 = scmp.ne.s32.totalorder %s152, %s154
    %p158 = scmp.eq.s32.totalorder %s13, 0
    %p159 = por %p157, %p158
    %p160 = scmp.ne.s32.totalorder %s152, %s154
    %p161 = scmp.eq.s32.totalorder %s18, 1
    %p162 = por %p160, %p161
    %p163 = scmp.ne.s32.totalorder %s154, %s155
    %p164 = scmp.eq.s32.totalorder %s18, 0
    %p165 = por %p163, %p164
    %p166 = scmp.ne.s32.totalorder %s154, %s155
    %p167 = scmp.eq.s32.totalorder %s19, 1
    %p168 = por %p166, %p167
    %p170 = scmp.ne.s32.totalorder %s155, %s169
    %p171 = scmp.eq.s32.totalorder %s19, 0
    %p172 = por %p170, %p171
    %s173 = ssub.s32 %s13, %s20
    %p174 = scmp.eq.s32.totalorder %s173, 0
    %s176 = sadd.s32 %s175, 1
    %s177 = scalar_select %p174, %s175, %s176
    %p180 = pneg %p174
    %p181 = scmp.eq.s32.totalorder %s13, 1
    %p182 = por %p180, %p181
    %p183 = scmp.ne.s32.totalorder %s175, %s178
    %p184 = scmp.eq.s32.totalorder %s13, 0
    %p185 = por %p183, %p184
    %p186 = scmp.ne.s32.totalorder %s175, %s178
    %p187 = scmp.eq.s32.totalorder %s18, 1
    %p188 = por %p186, %p187
    %p189 = scmp.ne.s32.totalorder %s178, %s179
    %p190 = scmp.eq.s32.totalorder %s18, 0
    %p191 = por %p189, %p190
    %p192 = scmp.ne.s32.totalorder %s178, %s179
    %p193 = scmp.eq.s32.totalorder %s19, 1
    %p194 = por %p192, %p193
    %p196 = scmp.ne.s32.totalorder %s179, %s195
    %p197 = scmp.eq.s32.totalorder %s19, 0
    %p198 = por %p196, %p197
    %p199 = scmp.le.s32.totalorder 1, %s13
    %p200 = scmp.lt.s32.totalorder %s13, 3
    %p201 = pnand %p199, %p200
    %p202 = pneg %p201
    // Predicated region
    $region9: #{vit_forward_pallas.6} parent=5 // pred_check
      _
    $region10: #{vit_forward_pallas.6} parent=5 // pred_check_branch
      %204 = sbr.rel (%p201) target = $region12
    $region11: #{vit_forward_pallas.6} parent=5 // pred_region
      %s205 = ssub.s32 %s13, 1
      // Predicated region
      $region13: #{vit_forward_pallas.6} parent=11 // pred_check
        %p206 = pneg %p60
      $region14: #{vit_forward_pallas.6} parent=11 // pred_check_branch
        %208 = sbr.rel (%p206) target = $region16
      $region15: #{vit_forward_pallas.6} parent=11 // pred_region
        _
      $region16: #{vit_forward_pallas.6} parent=11 // pred_fallthru
        _
      // Predicated region
      $region17: #{vit_forward_pallas.6} parent=11 // pred_check
        %p209 = pneg %p81
      $region18: #{vit_forward_pallas.6} parent=11 // pred_check_branch
        %211 = sbr.rel (%p209) target = $region20
      $region19: #{vit_forward_pallas.6} parent=11 // pred_region
        _
      $region20: #{vit_forward_pallas.6} parent=11 // pred_fallthru
        _
      // Predicated region
      $region21: #{vit_forward_pallas.6} parent=11 // pred_check
        %p212 = pneg %p102
      $region22: #{vit_forward_pallas.6} parent=11 // pred_check_branch
        %214 = sbr.rel (%p212) target = $region24
      $region23: #{vit_forward_pallas.6} parent=11 // pred_region
        _
      $region24: #{vit_forward_pallas.6} parent=11 // pred_fallthru
        _
      // Predicated region
      $region25: #{vit_forward_pallas.6} parent=11 // pred_check
        %p215 = pneg %p123
      $region26: #{vit_forward_pallas.6} parent=11 // pred_check_branch
        %217 = sbr.rel (%p215) target = $region28
      $region27: #{vit_forward_pallas.6} parent=11 // pred_region
        _
      $region28: #{vit_forward_pallas.6} parent=11 // pred_fallthru
        _
      // Predicated region
      $region29: #{vit_forward_pallas.6} parent=11 // pred_check
        %p218 = pneg %p144
      $region30: #{vit_forward_pallas.6} parent=11 // pred_check_branch
        %220 = sbr.rel (%p218) target = $region32
      $region31: #{vit_forward_pallas.6} parent=11 // pred_region
        _
      $region32: #{vit_forward_pallas.6} parent=11 // pred_fallthru
        _
      // Predicated region
      $region33: #{vit_forward_pallas.6} parent=11 // pred_check
        %p221 = pneg %p165
      $region34: #{vit_forward_pallas.6} parent=11 // pred_check_branch
        %223 = sbr.rel (%p221) target = $region36
      $region35: #{vit_forward_pallas.6} parent=11 // pred_region
        _
      $region36: #{vit_forward_pallas.6} parent=11 // pred_fallthru
        _
    $region12: #{vit_forward_pallas.6} parent=5 // pred_fallthru
      _
    %p224 = scmp.lt.s32.totalorder %s13, 2
    // Predicated region
    $region37: #{vit_forward_pallas.6} parent=5 // pred_check
      %p225 = pneg %p224
    $region38: #{vit_forward_pallas.6} parent=5 // pred_check_branch
      %227 = sbr.rel (%p225) target = $region40
    $region39: #{vit_forward_pallas.6} parent=5 // pred_region
      // Predicated region
      $region41: #{vit_forward_pallas.6} parent=39 // pred_check
        %p228 = pneg %p33
      $region42: #{vit_forward_pallas.6} parent=39 // pred_check_branch
        %230 = sbr.rel (%p228) target = $region44
      $region43: #{vit_forward_pallas.6} parent=39 // pred_region
        %p231 = scmp.lt.s32.totalorder %s13, 1
        %s232 = scalar_select %p231, %s13, 1
        %s233 = smul.addr %s232, 8
        %s234 = scalar_lea.vmem %s0, %s233
      $region44: #{vit_forward_pallas.6} parent=39 // pred_fallthru
        _
    $region40: #{vit_forward_pallas.6} parent=5 // pred_fallthru
      _
    %p235 = scmp.le.s32.totalorder 1, %s13
    %p236 = scmp.lt.s32.totalorder %s13, 3
    %p237 = pnand %p235, %p236
    %p238 = pneg %p237
    // Predicated region
    $region45: #{vit_forward_pallas.6} parent=5 // pred_check
      _
    $region46: #{vit_forward_pallas.6} parent=5 // pred_check_branch
      %240 = sbr.rel (%p237) target = $region48
    $region47: #{vit_forward_pallas.6} parent=5 // pred_region
      %s241 = ssub.s32 %s13, 1
      %p242 = scmp.lt.s32.totalorder %s18, 1
      %s243 = scalar_select %p242, %s18, 1
      %s244 = smul.addr %s243, 8
      %s245 = scalar_lea.vmem %s0, %s244
      %p246 = pneg %p39
      %p247 = pneg %p36
      %p248 = pneg %p60
      %p249 = pneg %p57
      %p250 = pneg %p81
      %p251 = pneg %p78
      %p252 = pneg %p102
      %p253 = pneg %p99
      %p254 = pneg %p123
      %p255 = pneg %p120
      %p256 = pneg %p144
      %p257 = pneg %p141
      %p258 = pneg %p165
      %p259 = pneg %p162
      %p260 = pneg %p191
      %p261 = pneg %p188
      %p262 = scmp.lt.s32.totalorder %s18, 1
      %s263 = scalar_select %p262, %s18, 1
      %s264 = smul.addr %s263, 8
      %s265 = scalar_lea.vmem %s7, %s264
      %p266 = scmp.lt.s32.totalorder %s18, 1
      %s267 = scalar_select %p266, %s18, 1
      %s268 = smul.addr %s267, 8
      %s269 = scalar_lea.vmem %s0, %s268
      %p270 = scmp.lt.s32.totalorder %s18, 1
      %s271 = scalar_select %p270, %s18, 1
      %s272 = smul.addr %s271, 8
      %s273 = scalar_lea.vmem %s7, %s272
      %v275 = vld [vmem:[%s269] sm:$0xff]
      %v276 = vpack.c.bf16 %v275, %v275
      %v277 = vld [vmem:[%s1] sm:$0xf]
      %v278 = vld [vmem:[%s1 + $0x4] sm:$0xf]
      %v279 = vld [vmem:[%s1 + $0x8] sm:$0xf]
      %v280 = vld [vmem:[%s1 + $0xc] sm:$0xf]
      %v281 = vld [vmem:[%s2] sm:$0x1]
      %v283 = vperm.slane %v281, 0
      %v289 = vunpack.c.l.b16 %v277
      %v290 = vunpack.c.l.b16 %v278
      %v291 = vunpack.c.l.b16 %v279
      %v292 = vunpack.c.l.b16 %v280
      %v293 = vpack.c.b16 %v290, %v289
      %v294 = vpack.c.b16 %v292, %v291
      %vm297 = vcmask 261120
      %v299 = vsel %vm297, %v276, 0
      %301 = vmatpush.bf16.msra.mxu0 0
      %302 = vmatpush.bf16.msra.mxu0 0
      %303 = vmatpush.bf16.msra.mxu0 0
      %304 = vmatpush.bf16.msra.mxu0 0
      %305 = vmatpush.bf16.msra.mxu0 0
      %306 = vmatpush.bf16.msra.mxu0 0
      %307 = vmatpush.bf16.msra.mxu0 %v294
      %308 = vmatpush.bf16.msra.mxu0 %v293
      %309 = vmatmul.bf16.gmra.mxu0 %v299
      %v310 = vpop.f32.mrf.mxu0
      %v311 = vadd.f32 %v283, %v310
      %v312 = vpop.f32.mrf.mxu0
      %313 = vdwg.mxu0
      %v315 = vrot.slane %v311, 1
      %vm317 = vcmask 1046528
      %v318 = vsel %vm317, %v315, %v315
      %v319 = vrot.slane %v311, 7
      %vm321 = vcmask 1040384
      %v322 = vsel %vm321, %v319, %v319
      %v323 = vlaneseq
      %v324 = vshrl.u32 %v323, 7
      %vm325 = vcmp.lt.s32.totalorder %v324, 0
      %v326 = vsub.s32 0, %v324
      %v327 = vsel %vm325, %v326, %v324
      %v328 = vshrl.u32 %v327, 1
      %v329 = vand.u32 %v327, 1
      %v330 = vsub.s32 0, %v329
      %v331 = vsel %vm325, %v330, %v329
      %vm332 = vcmp.ne.s32.totalorder %v331, 0
      %vm333 = vcmp.lt.s32.totalorder %v331, 0
      %vm334 = vmand %vm333, %vm332
      %v335 = vadd.s32 %v331, 2
      %v336 = vsel %vm334, %v335, %v331
      %v337 = vadd.s32 %v336, 1
      %vm338 = vcmp.ge.s32.totalorder %v337, 2
      %v339 = vsel %vm338, 1, 0
      %vm340 = vcmp.eq.s32.totalorder %v339, 1
      %v341 = vsel %vm340, %v322, %v318
      %342 = vrot.lane.b32.xlu0 %v311, 96
      %v343 = vpop.permute.xlu0 %342
      %v345 = vmul.f32 %v311, %v343
      %vm346 = vcmask 64512
      %v347 = vsel %vm346, %v345, 0.0
      %348 = vadd.xlane.f32.xlu0 %v347
      %v349 = vpop.xlane.xlu0 %348
      %351 = vrot.lane.b32.xlu0 %v341, 96
      %v352 = vpop.permute.xlu0 %351
      %v354 = vmul.f32 %v311, %v352
      %v355 = vsel %vm346, %v354, 0.0
      %356 = vadd.xlane.f32.xlu0 %v355
      %v357 = vpop.xlane.xlu0 %356
      %v358 = vmax.f32 %v349, %v357
      %v359 = vsub.f32 %v349, %v358
      %v360 = vmul.f32 %v359, 1.442695
      %v361 = vpow.pop %v360
      %v362 = vsub.f32 %v357, %v358
      %v363 = vmul.f32 %v362, 1.442695
      %v364 = vpow.pop %v363
      %v365 = vadd.f32 %v361, %v364
      %v366 = vmul.f32 %v361, %v311
      %v367 = vmul.f32 %v364, %v341
      %v368 = vadd.f32 %v366, %v367
      %v369 = vrcp.pop %v365
      %v370 = vmul.f32 %v368, %v369
      %v371 = vpack.c.bf16 %v370, %v370
      %v372 = vld [vmem:[%s3] sm:$0xf]
      %374 = vrot.lane.b32.xlu0 %v345, 120
      %v375 = vpop.permute.xlu0 %374
      %v377 = vsel %vm346, %v375, 0.0
      %378 = vadd.xlane.f32.xlu0 %v377
      %v379 = vpop.xlane.xlu0 %378
      %381 = vrot.lane.b32.xlu0 %v354, 120
      %v382 = vpop.permute.xlu0 %381
      %v384 = vsel %vm346, %v382, 0.0
      %385 = vadd.xlane.f32.xlu0 %v384
      %v386 = vpop.xlane.xlu0 %385
      %v387 = vmax.f32 %v379, %v386
      %v388 = vsub.f32 %v379, %v387
      %v389 = vmul.f32 %v388, 1.442695
      %v390 = vpow.pop %v389
      %v391 = vsub.f32 %v386, %v387
      %v392 = vmul.f32 %v391, 1.442695
      %v393 = vpow.pop %v392
      %v394 = vadd.f32 %v390, %v393
      %v395 = vmul.f32 %v390, %v311
      %v396 = vmul.f32 %v393, %v341
      %v397 = vadd.f32 %v395, %v396
      %v398 = vrcp.pop %v394
      %v399 = vmul.f32 %v397, %v398
      %v400 = vpack.c.bf16 %v399, %v399
      %v401 = vld [vmem:[%s3 + $0x4] sm:$0xf]
      %403 = vrot.lane.b32.xlu0 %v400, 56
      %v404 = vpop.permute.xlu0 %403
      %v406 = vsel %vm346, %v404, 0
      %vm408 = vcmask 1043456
      %v410 = vsel %vm408, %v401, 0
      %412 = vmatpush.bf16.msra.mxu0 0
      %413 = vmatpush.bf16.msra.mxu0 0
      %414 = vmatpush.bf16.msra.mxu0 0
      %415 = vmatpush.bf16.msra.mxu0 0
      %416 = vmatpush.bf16.msra.mxu0 0
      %417 = vmatpush.bf16.msra.mxu0 0
      %418 = vmatpush.bf16.msra.mxu0 0
      %419 = vmatpush.bf16.msra.mxu0 %v410
      %420 = vmatmul.bf16.gmra.mxu0 %v406
      %v421 = vpop.f32.mrf.mxu0
      %v422 = vadd.f32 0.0, %v421
      %v423 = vpop.f32.mrf.mxu0
      %424 = vdwg.mxu0
      %426 = vrot.lane.b32.xlu0 %v371, 64
      %v427 = vpop.permute.xlu0 %426
      %v429 = vsel %vm346, %v427, 0
      %v432 = vsel %vm408, %v372, 0
      %434 = vmatpush.bf16.msra.mxu0 0
      %435 = vmatpush.bf16.msra.mxu0 0
      %436 = vmatpush.bf16.msra.mxu0 0
      %437 = vmatpush.bf16.msra.mxu0 0
      %438 = vmatpush.bf16.msra.mxu0 0
      %439 = vmatpush.bf16.msra.mxu0 0
      %440 = vmatpush.bf16.msra.mxu0 0
      %441 = vmatpush.bf16.msra.mxu0 %v432
      %442 = vmatmul.bf16.gmra.mxu0 %v429
      %v443 = vpop.f32.mrf.mxu0
      %v444 = vadd.f32 %v422, %v443
      %v445 = vpop.f32.mrf.mxu0
      %446 = vdwg.mxu0
      %447 = vrot.lane.b32.xlu0 %v345, 112
      %v448 = vpop.permute.xlu0 %447
      %v450 = vsel %vm346, %v448, 0.0
      %451 = vadd.xlane.f32.xlu0 %v450
      %v452 = vpop.xlane.xlu0 %451
      %453 = vrot.lane.b32.xlu0 %v354, 112
      %v454 = vpop.permute.xlu0 %453
      %v456 = vsel %vm346, %v454, 0.0
      %457 = vadd.xlane.f32.xlu0 %v456
      %v458 = vpop.xlane.xlu0 %457
      %v459 = vmax.f32 %v452, %v458
      %v460 = vsub.f32 %v452, %v459
      %v461 = vmul.f32 %v460, 1.442695
      %v462 = vpow.pop %v461
      %v463 = vsub.f32 %v458, %v459
      %v464 = vmul.f32 %v463, 1.442695
      %v465 = vpow.pop %v464
      %v466 = vadd.f32 %v462, %v465
      %v467 = vmul.f32 %v462, %v311
      %v468 = vmul.f32 %v465, %v341
      %v469 = vadd.f32 %v467, %v468
      %v470 = vrcp.pop %v466
      %v471 = vmul.f32 %v469, %v470
      %v472 = vpack.c.bf16 %v471, %v471
      %v473 = vld [vmem:[%s3 + $0x8] sm:$0xf]
      %475 = vrot.lane.b32.xlu0 %v472, 48
      %v476 = vpop.permute.xlu0 %475
      %v478 = vsel %vm346, %v476, 0
      %v481 = vsel %vm408, %v473, 0
      %483 = vmatpush.bf16.msra.mxu0 0
      %484 = vmatpush.bf16.msra.mxu0 0
      %485 = vmatpush.bf16.msra.mxu0 0
      %486 = vmatpush.bf16.msra.mxu0 0
      %487 = vmatpush.bf16.msra.mxu0 0
      %488 = vmatpush.bf16.msra.mxu0 0
      %489 = vmatpush.bf16.msra.mxu0 0
      %490 = vmatpush.bf16.msra.mxu0 %v481
      %491 = vmatmul.bf16.gmra.mxu0 %v478
      %v492 = vpop.f32.mrf.mxu0
      %v493 = vadd.f32 0.0, %v492
      %v494 = vpop.f32.mrf.mxu0
      %495 = vdwg.mxu0
      %v496 = vadd.f32 %v444, %v493
      %497 = vrot.lane.b32.xlu0 %v345, 104
      %v498 = vpop.permute.xlu0 %497
      %v500 = vsel %vm346, %v498, 0.0
      %501 = vadd.xlane.f32.xlu0 %v500
      %v502 = vpop.xlane.xlu0 %501
      %503 = vrot.lane.b32.xlu0 %v354, 104
      %v504 = vpop.permute.xlu0 %503
      %v506 = vsel %vm346, %v504, 0.0
      %507 = vadd.xlane.f32.xlu0 %v506
      %v508 = vpop.xlane.xlu0 %507
      %v509 = vmax.f32 %v502, %v508
      %v510 = vsub.f32 %v502, %v509
      %v511 = vmul.f32 %v510, 1.442695
      %v512 = vpow.pop %v511
      %v513 = vsub.f32 %v508, %v509
      %v514 = vmul.f32 %v513, 1.442695
      %v515 = vpow.pop %v514
      %v516 = vadd.f32 %v512, %v515
      %v517 = vmul.f32 %v512, %v311
      %v518 = vmul.f32 %v515, %v341
      %v519 = vadd.f32 %v517, %v518
      %v520 = vrcp.pop %v516
      %v521 = vmul.f32 %v519, %v520
      %v522 = vpack.c.bf16 %v521, %v521
      %v523 = vld [vmem:[%s3 + $0xc] sm:$0xf]
      %525 = vrot.lane.b32.xlu0 %v522, 40
      %v526 = vpop.permute.xlu0 %525
      %v528 = vsel %vm346, %v526, 0
      %v531 = vsel %vm408, %v523, 0
      %533 = vmatpush.bf16.msra.mxu0 0
      %534 = vmatpush.bf16.msra.mxu0 0
      %535 = vmatpush.bf16.msra.mxu0 0
      %536 = vmatpush.bf16.msra.mxu0 0
      %537 = vmatpush.bf16.msra.mxu0 0
      %538 = vmatpush.bf16.msra.mxu0 0
      %539 = vmatpush.bf16.msra.mxu0 0
      %540 = vmatpush.bf16.msra.mxu0 %v531
      %541 = vmatmul.bf16.gmra.mxu0 %v528
      %v542 = vpop.f32.mrf.mxu0
      %v543 = vadd.f32 0.0, %v542
      %v544 = vpop.f32.mrf.mxu0
      %545 = vdwg.mxu0
      %v546 = vadd.f32 %v496, %v543
      %v547 = vadd.f32 %v275, %v546
      %v548 = vld [vmem:[%s4] sm:$0x1]
      %v550 = vperm.slane %v548, 0
      %v552 = vadd.f32 %v547, %v550
      %v553 = vld [vmem:[%s5] sm:$0x1]
      %v554 = vld [vmem:[%s6] sm:$0x1]
      %v555 = vsel %vm297, %v552, 0.0
      %556 = vadd.xlane.f32.xlu0 %v555
      %v557 = vpop.xlane.xlu0 %556
      %v558 = vrcp.pop 32.0
      %v559 = vmul.f32 32.0, %v558
      %v560 = vsub.f32 1.0, %v559
      %v561 = vmul.f32 %v558, %v560
      %v562 = vadd.f32 %v558, %v561
      %vm563 = vweird.f32 %v558
      %v564 = vsel %vm563, %v558, %v562
      %v565 = vmul.f32 %v557, %v564
      %v566 = vsub.f32 %v552, %v565
      %v567 = vmul.f32 %v566, %v566
      %v568 = vsel %vm297, %v567, 0.0
      %569 = vadd.xlane.f32.xlu0 %v568
      %v570 = vpop.xlane.xlu0 %569
      %v571 = vmul.f32 %v570, %v564
      %v572 = vadd.f32 %v571, 1e-05
      %v573 = vrsqrt.pop %v572
      %v574 = vmul.f32 %v573, %v572
      %v575 = vmul.f32 %v574, %v573
      %v576 = vmul.f32 0.5, %v575
      %v577 = vsub.f32 1.5, %v576
      %v578 = vmul.f32 %v573, %v577
      %vm579 = vweird.f32 %v572
      %vm580 = vweird.f32 %v573
      %vm581 = vmor %vm579, %vm580
      %v582 = vsel %vm581, %v573, %v578
      %v583 = vmul.f32 %v566, %v582
      %v585 = vperm.slane %v553, 0
      %v587 = vmul.f32 %v583, %v585
      %v589 = vperm.slane %v554, 0
      %v591 = vadd.f32 %v587, %v589
      %592 = vst.msk [vmem:[%s273] sm:$0xff] %vm297, %v591
      %p593 = scmp.lt.s32.totalorder %s18, 1
      %s594 = scalar_select %p593, %s18, 1
      %s595 = smul.addr %s594, 8
      %s596 = scalar_lea.vmem %s7, %s595
      // Predicated region
      $region49: #{vit_forward_pallas.6} parent=47 // pred_check
        %p597 = pneg %p188
      $region50: #{vit_forward_pallas.6} parent=47 // pred_check_branch
        %599 = sbr.rel (%p597) target = $region52
      $region51: #{vit_forward_pallas.6} parent=47 // pred_region
        _
      $region52: #{vit_forward_pallas.6} parent=47 // pred_fallthru
        _
    $region48: #{vit_forward_pallas.6} parent=5 // pred_fallthru
      _
    %p600 = scmp.le.s32.totalorder 2, %s13
    // Predicated region
    $region53: #{vit_forward_pallas.6} parent=5 // pred_check
      %p601 = pneg %p600
    $region54: #{vit_forward_pallas.6} parent=5 // pred_check_branch
      %603 = sbr.rel (%p601) target = $region56
    $region55: #{vit_forward_pallas.6} parent=5 // pred_region
      %s604 = ssub.s32 %s13, 2
      // Predicated region
      $region57: #{vit_forward_pallas.6} parent=55 // pred_check
        %p605 = pneg %p194
      $region58: #{vit_forward_pallas.6} parent=55 // pred_check_branch
        %607 = sbr.rel (%p605) target = $region60
      $region59: #{vit_forward_pallas.6} parent=55 // pred_region
        %p608 = scmp.lt.s32.totalorder %s19, 1
        %s609 = scalar_select %p608, %s19, 1
        %s610 = smul.addr %s609, 8
        %s611 = scalar_lea.vmem %s7, %s610
      $region60: #{vit_forward_pallas.6} parent=55 // pred_fallthru
        _
    $region56: #{vit_forward_pallas.6} parent=5 // pred_fallthru
      _
  $region6: #{vit_forward_pallas.6} parent=0 // loop_footer
    %s17 = sadd.s32 1, %s13
  $region7: #{vit_forward_pallas.6} parent=0 // loop_footer_branch
    %12 = sbr.rel target = $region3
  $region8: #{vit_forward_pallas.6} parent=0 // loop_exit
    _

// kernel: vit_forward_pallas.7
$region0: #{vit_forward_pallas.7}
  #allocation0 [shape = 'u32[]', space=smem, size = 0x4, offset = 0x4, fixed_abs, tag = 'smem constant byte address 0x4 - core index']
  #allocation1 [shape = 'u32[72,128]{1,0:T(1,128)}', space=vmem, size = 0x9000, scoped, tag = 'internal scratch']
  #allocation2 [shape = 'f32[8,32]{1,0:T(8,128)}', space=vmem, size = 0x1000, scoped, tag = 'scratch operand']
  %s0 = inlined_call_operand.vmem [shape: f32[16,32], index: 0, kind: input, shape index: {}]
  %s1 = inlined_call_operand.vmem [shape: bf16[32,128], index: 1, kind: input, shape index: {}]
  %s2 = inlined_call_operand.vmem [shape: f32[1,128], index: 2, kind: input, shape index: {}]
  %s3 = inlined_call_operand.vmem [shape: bf16[128,32], index: 3, kind: input, shape index: {}]
  %s4 = inlined_call_operand.vmem [shape: f32[1,32], index: 4, kind: input, shape index: {}]
  %s5 = inlined_call_operand.vmem [shape: f32[1,32], index: 5, kind: input, shape index: {}]
  %s6 = inlined_call_operand.vmem [shape: f32[1,32], index: 6, kind: input, shape index: {}]
  %s7 = inlined_call_operand.vmem [shape: f32[16,32], index: 7, kind: output, shape index: {}]
  %s8 = sld [smem:[#allocation0]]
  $region69: #{vit_forward_pallas.7} parent=0
    _
  %s10 = ssub.s32 1, %s8
  %s11 = scalar_select 0, %s10, %s8
  loop: start=0, step=1, limit=4
  $region2: #{vit_forward_pallas.7} parent=0 // loop_pre_header
    _
  $region3: #{vit_forward_pallas.7} parent=0 // loop_header
    %s13 = sphi 0, %s17
    %p14 = scmp.ge.s32.totalorder %s13, 4
    %s20 = sphi 0, %s32
    %s21 = sphi 0, %s28
    %s22 = sphi 0, %s20
    %s23 = sphi 0, %s21
    %s24 = sphi 0, %s22
    %s25 = sphi 0, %s23
    %s35 = sphi 0, %s37
    %s38 = sphi 0, %s35
    %s39 = sphi 0, %s38
    %s55 = sphi 0, %s39
    %s61 = sphi 0, %s63
    %s64 = sphi 0, %s61
    %s65 = sphi 0, %s64
    %s81 = sphi 0, %s65
    %s87 = sphi 0, %s89
    %s90 = sphi 0, %s87
    %s91 = sphi 0, %s90
    %s107 = sphi 0, %s91
    %s113 = sphi 0, %s115
    %s116 = sphi 0, %s113
    %s117 = sphi 0, %s116
    %s133 = sphi 0, %s117
    %s137 = sphi 0, %s137
    %s139 = sphi 0, %s137
    %s140 = sphi 0, %s139
    %s154 = sphi 0, %s140
    %s158 = sphi 0, %s158
    %s160 = sphi 0, %s158
    %s161 = sphi 0, %s160
    %s175 = sphi 0, %s161
    %s179 = sphi 0, %s179
    %s181 = sphi 0, %s179
    %s182 = sphi 0, %s181
    %s196 = sphi 0, %s182
    %s202 = sphi 0, %s204
    %s205 = sphi 0, %s202
    %s206 = sphi 0, %s205
    %s222 = sphi 0, %s206
  $region4: #{vit_forward_pallas.7} parent=0 // loop_header_branch
    %16 = sbr.rel (%p14) target = $region8
  $region5: #{vit_forward_pallas.7} parent=0 // loop_body
    %s18 = ssub.s32 %s13, 1
    %s19 = ssub.s32 %s13, 2
    %s26 = sadd.s32 1, %s21
    %p27 = scmp.ge.s32.totalorder %s26, 1
    %s28 = scalar_select %p27, 0, %s26
    %s29 = sadd.s32 1, %s20
    %s30 = scalar_select %p27, %s29, %s20
    %p31 = scmp.ge.s32.totalorder %s30, 2
    %s32 = scalar_select %p31, 0, %s30
    %s33 = ssub.s32 %s20, %s32
    %p34 = scmp.eq.s32.totalorder %s33, 0
    %s36 = sadd.s32 %s35, 1
    %s37 = scalar_select %p34, %s35, %s36
    %p40 = pneg %p34
    %p41 = scmp.eq.s32.totalorder %s13, 1
    %p42 = por %p40, %p41
    %p43 = scmp.ne.s32.totalorder %s35, %s38
    %p44 = scmp.eq.s32.totalorder %s13, 0
    %p45 = por %p43, %p44
    %p46 = scmp.ne.s32.totalorder %s35, %s38
    %p47 = scmp.eq.s32.totalorder %s18, 1
    %p48 = por %p46, %p47
    %p49 = scmp.ne.s32.totalorder %s38, %s39
    %p50 = scmp.eq.s32.totalorder %s18, 0
    %p51 = por %p49, %p50
    %p52 = scmp.ne.s32.totalorder %s38, %s39
    %p53 = scmp.eq.s32.totalorder %s19, 1
    %p54 = por %p52, %p53
    %p56 = scmp.ne.s32.totalorder %s39, %s55
    %p57 = scmp.eq.s32.totalorder %s19, 0
    %p58 = por %p56, %p57
    %s59 = ssub.s32 %s21, %s28
    %p60 = scmp.eq.s32.totalorder %s59, 0
    %s62 = sadd.s32 %s61, 1
    %s63 = scalar_select %p60, %s61, %s62
    %p66 = pneg %p60
    %p67 = scmp.eq.s32.totalorder %s13, 1
    %p68 = por %p66, %p67
    %p69 = scmp.ne.s32.totalorder %s61, %s64
    %p70 = scmp.eq.s32.totalorder %s13, 0
    %p71 = por %p69, %p70
    %p72 = scmp.ne.s32.totalorder %s61, %s64
    %p73 = scmp.eq.s32.totalorder %s18, 1
    %p74 = por %p72, %p73
    %p75 = scmp.ne.s32.totalorder %s64, %s65
    %p76 = scmp.eq.s32.totalorder %s18, 0
    %p77 = por %p75, %p76
    %p78 = scmp.ne.s32.totalorder %s64, %s65
    %p79 = scmp.eq.s32.totalorder %s19, 1
    %p80 = por %p78, %p79
    %p82 = scmp.ne.s32.totalorder %s65, %s81
    %p83 = scmp.eq.s32.totalorder %s19, 0
    %p84 = por %p82, %p83
    %s85 = ssub.s32 %s21, %s28
    %p86 = scmp.eq.s32.totalorder %s85, 0
    %s88 = sadd.s32 %s87, 1
    %s89 = scalar_select %p86, %s87, %s88
    %p92 = pneg %p86
    %p93 = scmp.eq.s32.totalorder %s13, 1
    %p94 = por %p92, %p93
    %p95 = scmp.ne.s32.totalorder %s87, %s90
    %p96 = scmp.eq.s32.totalorder %s13, 0
    %p97 = por %p95, %p96
    %p98 = scmp.ne.s32.totalorder %s87, %s90
    %p99 = scmp.eq.s32.totalorder %s18, 1
    %p100 = por %p98, %p99
    %p101 = scmp.ne.s32.totalorder %s90, %s91
    %p102 = scmp.eq.s32.totalorder %s18, 0
    %p103 = por %p101, %p102
    %p104 = scmp.ne.s32.totalorder %s90, %s91
    %p105 = scmp.eq.s32.totalorder %s19, 1
    %p106 = por %p104, %p105
    %p108 = scmp.ne.s32.totalorder %s91, %s107
    %p109 = scmp.eq.s32.totalorder %s19, 0
    %p110 = por %p108, %p109
    %s111 = ssub.s32 %s21, %s28
    %p112 = scmp.eq.s32.totalorder %s111, 0
    %s114 = sadd.s32 %s113, 1
    %s115 = scalar_select %p112, %s113, %s114
    %p118 = pneg %p112
    %p119 = scmp.eq.s32.totalorder %s13, 1
    %p120 = por %p118, %p119
    %p121 = scmp.ne.s32.totalorder %s113, %s116
    %p122 = scmp.eq.s32.totalorder %s13, 0
    %p123 = por %p121, %p122
    %p124 = scmp.ne.s32.totalorder %s113, %s116
    %p125 = scmp.eq.s32.totalorder %s18, 1
    %p126 = por %p124, %p125
    %p127 = scmp.ne.s32.totalorder %s116, %s117
    %p128 = scmp.eq.s32.totalorder %s18, 0
    %p129 = por %p127, %p128
    %p130 = scmp.ne.s32.totalorder %s116, %s117
    %p131 = scmp.eq.s32.totalorder %s19, 1
    %p132 = por %p130, %p131
    %p134 = scmp.ne.s32.totalorder %s117, %s133
    %p135 = scmp.eq.s32.totalorder %s19, 0
    %p136 = por %p134, %p135
    %s138 = sadd.s32 %s137, 1
    %p141 = scmp.eq.s32.totalorder %s13, 1
    %p142 = scmp.ne.s32.totalorder %s137, %s139
    %p143 = scmp.eq.s32.totalorder %s13, 0
    %p144 = por %p142, %p143
    %p145 = scmp.ne.s32.totalorder %s137, %s139
    %p146 = scmp.eq.s32.totalorder %s18, 1
    %p147 = por %p145, %p146
    %p148 = scmp.ne.s32.totalorder %s139, %s140
    %p149 = scmp.eq.s32.totalorder %s18, 0
    %p150 = por %p148, %p149
    %p151 = scmp.ne.s32.totalorder %s139, %s140
    %p152 = scmp.eq.s32.totalorder %s19, 1
    %p153 = por %p151, %p152
    %p155 = scmp.ne.s32.totalorder %s140, %s154
    %p156 = scmp.eq.s32.totalorder %s19, 0
    %p157 = por %p155, %p156
    %s159 = sadd.s32 %s158, 1
    %p162 = scmp.eq.s32.totalorder %s13, 1
    %p163 = scmp.ne.s32.totalorder %s158, %s160
    %p164 = scmp.eq.s32.totalorder %s13, 0
    %p165 = por %p163, %p164
    %p166 = scmp.ne.s32.totalorder %s158, %s160
    %p167 = scmp.eq.s32.totalorder %s18, 1
    %p168 = por %p166, %p167
    %p169 = scmp.ne.s32.totalorder %s160, %s161
    %p170 = scmp.eq.s32.totalorder %s18, 0
    %p171 = por %p169, %p170
    %p172 = scmp.ne.s32.totalorder %s160, %s161
    %p173 = scmp.eq.s32.totalorder %s19, 1
    %p174 = por %p172, %p173
    %p176 = scmp.ne.s32.totalorder %s161, %s175
    %p177 = scmp.eq.s32.totalorder %s19, 0
    %p178 = por %p176, %p177
    %s180 = sadd.s32 %s179, 1
    %p183 = scmp.eq.s32.totalorder %s13, 1
    %p184 = scmp.ne.s32.totalorder %s179, %s181
    %p185 = scmp.eq.s32.totalorder %s13, 0
    %p186 = por %p184, %p185
    %p187 = scmp.ne.s32.totalorder %s179, %s181
    %p188 = scmp.eq.s32.totalorder %s18, 1
    %p189 = por %p187, %p188
    %p190 = scmp.ne.s32.totalorder %s181, %s182
    %p191 = scmp.eq.s32.totalorder %s18, 0
    %p192 = por %p190, %p191
    %p193 = scmp.ne.s32.totalorder %s181, %s182
    %p194 = scmp.eq.s32.totalorder %s19, 1
    %p195 = por %p193, %p194
    %p197 = scmp.ne.s32.totalorder %s182, %s196
    %p198 = scmp.eq.s32.totalorder %s19, 0
    %p199 = por %p197, %p198
    %s200 = ssub.s32 %s20, %s32
    %p201 = scmp.eq.s32.totalorder %s200, 0
    %s203 = sadd.s32 %s202, 1
    %s204 = scalar_select %p201, %s202, %s203
    %p207 = pneg %p201
    %p208 = scmp.eq.s32.totalorder %s13, 1
    %p209 = por %p207, %p208
    %p210 = scmp.ne.s32.totalorder %s202, %s205
    %p211 = scmp.eq.s32.totalorder %s13, 0
    %p212 = por %p210, %p211
    %p213 = scmp.ne.s32.totalorder %s202, %s205
    %p214 = scmp.eq.s32.totalorder %s18, 1
    %p215 = por %p213, %p214
    %p216 = scmp.ne.s32.totalorder %s205, %s206
    %p217 = scmp.eq.s32.totalorder %s18, 0
    %p218 = por %p216, %p217
    %p219 = scmp.ne.s32.totalorder %s205, %s206
    %p220 = scmp.eq.s32.totalorder %s19, 1
    %p221 = por %p219, %p220
    %p223 = scmp.ne.s32.totalorder %s206, %s222
    %p224 = scmp.eq.s32.totalorder %s19, 0
    %p225 = por %p223, %p224
    %p226 = scmp.le.s32.totalorder 1, %s13
    %p227 = scmp.lt.s32.totalorder %s13, 3
    %p228 = pnand %p226, %p227
    %p229 = pneg %p228
    // Predicated region
    $region9: #{vit_forward_pallas.7} parent=5 // pred_check
      _
    $region10: #{vit_forward_pallas.7} parent=5 // pred_check_branch
      %231 = sbr.rel (%p228) target = $region12
    $region11: #{vit_forward_pallas.7} parent=5 // pred_region
      %s232 = ssub.s32 %s13, 1
      // Predicated region
      $region13: #{vit_forward_pallas.7} parent=11 // pred_check
        %p233 = pneg %p77
      $region14: #{vit_forward_pallas.7} parent=11 // pred_check_branch
        %235 = sbr.rel (%p233) target = $region16
      $region15: #{vit_forward_pallas.7} parent=11 // pred_region
        %p236 = scmp.lt.s32.totalorder %s23, 0
        %s237 = scalar_select %p236, %s23, 0
        %s238 = smul.addr %s237, 4
        %s239 = scalar_lea.vmem %s1, %s238
      $region16: #{vit_forward_pallas.7} parent=11 // pred_fallthru
        _
      // Predicated region
      $region17: #{vit_forward_pallas.7} parent=11 // pred_check
        %p240 = pneg %p103
      $region18: #{vit_forward_pallas.7} parent=11 // pred_check_branch
        %242 = sbr.rel (%p240) target = $region20
      $region19: #{vit_forward_pallas.7} parent=11 // pred_region
        %p243 = scmp.lt.s32.totalorder %s23, 0
        %s244 = scalar_select %p243, %s23, 0
        %s245 = scalar_lea.vmem %s2, %s244
      $region20: #{vit_forward_pallas.7} parent=11 // pred_fallthru
        _
      // Predicated region
      $region21: #{vit_forward_pallas.7} parent=11 // pred_check
        %p246 = pneg %p129
      $region22: #{vit_forward_pallas.7} parent=11 // pred_check_branch
        %248 = sbr.rel (%p246) target = $region24
      $region23: #{vit_forward_pallas.7} parent=11 // pred_region
        %s249 = smul.u32 16, %s23
        %p250 = scmp.lt.s32.totalorder %s249, 15
        %s251 = scalar_select %p250, %s249, 15
        %s252 = smul.addr %s251, 4
        %s253 = scalar_lea.vmem %s3, %s252
        %s254 = smul.u32 16, %s23
      $region24: #{vit_forward_pallas.7} parent=11 // pred_fallthru
        _
      // Predicated region
      $region25: #{vit_forward_pallas.7} parent=11 // pred_check
        %p255 = pneg %p150
      $region26: #{vit_forward_pallas.7} parent=11 // pred_check_branch
        %257 = sbr.rel (%p255) target = $region28
      $region27: #{vit_forward_pallas.7} parent=11 // pred_region
        _
      $region28: #{vit_forward_pallas.7} parent=11 // pred_fallthru
        _
      // Predicated region
      $region29: #{vit_forward_pallas.7} parent=11 // pred_check
        %p258 = pneg %p171
      $region30: #{vit_forward_pallas.7} parent=11 // pred_check_branch
        %260 = sbr.rel (%p258) target = $region32
      $region31: #{vit_forward_pallas.7} parent=11 // pred_region
        _
      $region32: #{vit_forward_pallas.7} parent=11 // pred_fallthru
        _
      // Predicated region
      $region33: #{vit_forward_pallas.7} parent=11 // pred_check
        %p261 = pneg %p192
      $region34: #{vit_forward_pallas.7} parent=11 // pred_check_branch
        %263 = sbr.rel (%p261) target = $region36
      $region35: #{vit_forward_pallas.7} parent=11 // pred_region
        _
      $region36: #{vit_forward_pallas.7} parent=11 // pred_fallthru
        _
    $region12: #{vit_forward_pallas.7} parent=5 // pred_fallthru
      _
    %p264 = scmp.lt.s32.totalorder %s13, 2
    // Predicated region
    $region37: #{vit_forward_pallas.7} parent=5 // pred_check
      %p265 = pneg %p264
    $region38: #{vit_forward_pallas.7} parent=5 // pred_check_branch
      %267 = sbr.rel (%p265) target = $region40
    $region39: #{vit_forward_pallas.7} parent=5 // pred_region
      // Predicated region
      $region41: #{vit_forward_pallas.7} parent=39 // pred_check
        %p268 = pneg %p45
      $region42: #{vit_forward_pallas.7} parent=39 // pred_check_branch
        %270 = sbr.rel (%p268) target = $region44
      $region43: #{vit_forward_pallas.7} parent=39 // pred_region
        %p271 = scmp.lt.s32.totalorder %s20, 1
        %s272 = scalar_select %p271, %s20, 1
        %s273 = smul.addr %s272, 8
        %s274 = scalar_lea.vmem %s0, %s273
      $region44: #{vit_forward_pallas.7} parent=39 // pred_fallthru
        _
    $region40: #{vit_forward_pallas.7} parent=5 // pred_fallthru
      _
    %p275 = scmp.le.s32.totalorder 1, %s13
    %p276 = scmp.lt.s32.totalorder %s13, 3
    %p277 = pnand %p275, %p276
    %p278 = pneg %p277
    // Predicated region
    $region45: #{vit_forward_pallas.7} parent=5 // pred_check
      _
    $region46: #{vit_forward_pallas.7} parent=5 // pred_check_branch
      %280 = sbr.rel (%p277) target = $region48
    $region47: #{vit_forward_pallas.7} parent=5 // pred_region
      %s281 = ssub.s32 %s13, 1
      %p282 = scmp.lt.s32.totalorder %s22, 1
      %s283 = scalar_select %p282, %s22, 1
      %s284 = smul.addr %s283, 8
      %s285 = scalar_lea.vmem %s0, %s284
      %p286 = pneg %p51
      %p287 = pneg %p48
      %p288 = scmp.lt.s32.totalorder %s23, 0
      %s289 = scalar_select %p288, %s23, 0
      %s290 = smul.addr %s289, 4
      %s291 = scalar_lea.vmem %s1, %s290
      %p292 = pneg %p77
      %p293 = pneg %p74
      %p294 = scmp.lt.s32.totalorder %s23, 0
      %s295 = scalar_select %p294, %s23, 0
      %s296 = scalar_lea.vmem %s2, %s295
      %p297 = pneg %p103
      %p298 = pneg %p100
      %s299 = smul.u32 16, %s23
      %p300 = scmp.lt.s32.totalorder %s299, 15
      %s301 = scalar_select %p300, %s299, 15
      %s302 = smul.addr %s301, 4
      %s303 = scalar_lea.vmem %s3, %s302
      %p304 = pneg %p129
      %p305 = pneg %p126
      %p306 = pneg %p150
      %p307 = pneg %p147
      %p308 = pneg %p171
      %p309 = pneg %p168
      %p310 = pneg %p192
      %p311 = pneg %p189
      %p312 = pneg %p218
      %p313 = pneg %p215
      %p314 = scmp.lt.s32.totalorder %s22, 1
      %s315 = scalar_select %p314, %s22, 1
      %s316 = smul.addr %s315, 8
      %s317 = scalar_lea.vmem %s7, %s316
      %p318 = scmp.lt.s32.totalorder %s22, 1
      %s319 = scalar_select %p318, %s22, 1
      %s320 = smul.addr %s319, 8
      %s321 = scalar_lea.vmem %s0, %s320
      %p322 = scmp.lt.s32.totalorder %s23, 0
      %s323 = scalar_select %p322, %s23, 0
      %s324 = smul.addr %s323, 4
      %s325 = scalar_lea.vmem %s1, %s324
      %p326 = scmp.lt.s32.totalorder %s23, 0
      %s327 = scalar_select %p326, %s23, 0
      %s328 = scalar_lea.vmem %s2, %s327
      %s329 = smul.u32 16, %s23
      %p330 = scmp.lt.s32.totalorder %s329, 15
      %s331 = scalar_select %p330, %s329, 15
      %s332 = smul.addr %s331, 4
      %s333 = scalar_lea.vmem %s3, %s332
      %s334 = smul.u32 16, %s23
      %p335 = scmp.lt.s32.totalorder %s22, 1
      %s336 = scalar_select %p335, %s22, 1
      %s337 = smul.addr %s336, 8
      %s338 = scalar_lea.vmem %s7, %s337
      %p340 = scmp.eq.s32.totalorder %s23, 0
      // Predicated region
      $region49: #{vit_forward_pallas.7} parent=47 // pred_check
        %p341 = pneg %p340
      $region50: #{vit_forward_pallas.7} parent=47 // pred_check_branch
        %343 = sbr.rel (%p341) target = $region52
      $region51: #{vit_forward_pallas.7} parent=47 // pred_region
        %vm344 = vcmask 261120
        %345 = vst.msk [vmem:[#allocation2] sm:$0xff] %vm344, 0.0
      $region52: #{vit_forward_pallas.7} parent=47 // pred_fallthru
        _
      %v346 = vld [vmem:[%s321] sm:$0xff]
      %v347 = vpack.c.bf16 %v346, %v346
      %v348 = vld [vmem:[%s325] sm:$0xf]
      %v349 = vld [vmem:[%s325 + $0x4] sm:$0xf]
      %v350 = vld [vmem:[%s325 + $0x8] sm:$0xf]
      %v351 = vld [vmem:[%s325 + $0xc] sm:$0xf]
      %v352 = vld [vmem:[%s328] sm:$0x1]
      %v354 = vperm.slane %v352, 0
      %v360 = vunpack.c.l.b16 %v348
      %v361 = vunpack.c.l.b16 %v349
      %v362 = vunpack.c.l.b16 %v350
      %v363 = vunpack.c.l.b16 %v351
      %v364 = vpack.c.b16 %v361, %v360
      %v365 = vpack.c.b16 %v363, %v362
      %vm368 = vcmask 261120
      %v370 = vsel %vm368, %v347, 0
      %372 = vmatpush.bf16.msra.mxu0 0
      %373 = vmatpush.bf16.msra.mxu0 0
      %374 = vmatpush.bf16.msra.mxu0 0
      %375 = vmatpush.bf16.msra.mxu0 0
      %376 = vmatpush.bf16.msra.mxu0 0
      %377 = vmatpush.bf16.msra.mxu0 0
      %378 = vmatpush.bf16.msra.mxu0 %v365
      %379 = vmatpush.bf16.msra.mxu0 %v364
      %380 = vmatmul.bf16.gmra.mxu0 %v370
      %v381 = vpop.f32.mrf.mxu0
      %v382 = vadd.f32 %v354, %v381
      %v383 = vpop.f32.mrf.mxu0
      %384 = vdwg.mxu0
      %v385 = vmax.f32 %v382, 0.0
      %v386 = vpack.c.bf16 %v385, %v385
      %v387 = vld [vmem:[#allocation2] sm:$0xff]
      %v388 = vld [vmem:[%s333] sm:$0xf]
      %v389 = vld [vmem:[%s333 + $0x4] sm:$0xf]
      %v390 = vld [vmem:[%s333 + $0x8] sm:$0xf]
      %v391 = vld [vmem:[%s333 + $0xc] sm:$0xf]
      %v392 = vld [vmem:[%s333 + $0x10] sm:$0xf]
      %v393 = vld [vmem:[%s333 + $0x14] sm:$0xf]
      %v394 = vld [vmem:[%s333 + $0x18] sm:$0xf]
      %v395 = vld [vmem:[%s333 + $0x1c] sm:$0xf]
      %v396 = vld [vmem:[%s333 + $0x20] sm:$0xf]
      %v397 = vld [vmem:[%s333 + $0x24] sm:$0xf]
      %v398 = vld [vmem:[%s333 + $0x28] sm:$0xf]
      %v399 = vld [vmem:[%s333 + $0x2c] sm:$0xf]
      %v400 = vld [vmem:[%s333 + $0x30] sm:$0xf]
      %v401 = vld [vmem:[%s333 + $0x34] sm:$0xf]
      %v402 = vld [vmem:[%s333 + $0x38] sm:$0xf]
      %v403 = vld [vmem:[%s333 + $0x3c] sm:$0xf]
      %v420 = vunpack.c.l.b16 %v388
      %v421 = vunpack.c.l.b16 %v389
      %v422 = vunpack.c.l.b16 %v390
      %v423 = vunpack.c.l.b16 %v391
      %v424 = vunpack.c.l.b16 %v392
      %v425 = vunpack.c.l.b16 %v393
      %v426 = vunpack.c.l.b16 %v394
      %v427 = vunpack.c.l.b16 %v395
      %v428 = vunpack.c.l.b16 %v396
      %v429 = vunpack.c.l.b16 %v397
      %v430 = vunpack.c.l.b16 %v398
      %v431 = vunpack.c.l.b16 %v399
      %v432 = vunpack.c.l.b16 %v400
      %v433 = vunpack.c.l.b16 %v401
      %v434 = vunpack.c.l.b16 %v402
      %v435 = vunpack.c.l.b16 %v403
      %v436 = vpack.c.b16 %v421, %v420
      %v437 = vpack.c.b16 %v423, %v422
      %v438 = vpack.c.b16 %v425, %v424
      %v439 = vpack.c.b16 %v427, %v426
      %v440 = vpack.c.b16 %v429, %v428
      %v441 = vpack.c.b16 %v431, %v430
      %v442 = vpack.c.b16 %v433, %v432
      %v443 = vpack.c.b16 %v435, %v434
      %452 = vmatpush.bf16.msra.mxu0 %v443
      %453 = vmatpush.bf16.msra.mxu0 %v442
      %454 = vmatpush.bf16.msra.mxu0 %v441
      %455 = vmatpush.bf16.msra.mxu0 %v440
      %456 = vmatpush.bf16.msra.mxu0 %v439
      %457 = vmatpush.bf16.msra.mxu0 %v438
      %458 = vmatpush.bf16.msra.mxu0 %v437
      %459 = vmatpush.bf16.msra.mxu0 %v436
      %460 = vmatmul.bf16.gmra.mxu0 %v386
      %v461 = vpop.f32.mrf.mxu0
      %v462 = vadd.f32 0.0, %v461
      %v463 = vpop.f32.mrf.mxu0
      %464 = vdwg.mxu0
      %v465 = vadd.f32 %v387, %v462
      %466 = vst.msk [vmem:[#allocation2] sm:$0xff] %vm368, %v465
      // Predicated region
      $region53: #{vit_forward_pallas.7} parent=47 // pred_check
        %p467 = pneg %p340
      $region54: #{vit_forward_pallas.7} parent=47 // pred_check_branch
        %469 = sbr.rel (%p467) target = $region56
      $region55: #{vit_forward_pallas.7} parent=47 // pred_region
        %v470 = vld [vmem:[%s321] sm:$0xff]
        %v471 = vld [vmem:[#allocation2] sm:$0xff]
        %v472 = vadd.f32 %v470, %v471
        %v473 = vld [vmem:[%s4] sm:$0x1]
        %v475 = vperm.slane %v473, 0
        %v477 = vadd.f32 %v472, %v475
        %v478 = vld [vmem:[%s5] sm:$0x1]
        %v479 = vld [vmem:[%s6] sm:$0x1]
        %v480 = vsel %vm368, %v477, 0.0
        %481 = vadd.xlane.f32.xlu0 %v480
        %v482 = vpop.xlane.xlu0 %481
        %v483 = vrcp.pop 32.0
        %v484 = vmul.f32 32.0, %v483
        %v485 = vsub.f32 1.0, %v484
        %v486 = vmul.f32 %v483, %v485
        %v487 = vadd.f32 %v483, %v486
        %vm488 = vweird.f32 %v483
        %v489 = vsel %vm488, %v483, %v487
        %v490 = vmul.f32 %v482, %v489
        %v491 = vsub.f32 %v477, %v490
        %v492 = vmul.f32 %v491, %v491
        %v493 = vsel %vm368, %v492, 0.0
        %494 = vadd.xlane.f32.xlu0 %v493
        %v495 = vpop.xlane.xlu0 %494
        %v496 = vmul.f32 %v495, %v489
        %v497 = vadd.f32 %v496, 1e-05
        %v498 = vrsqrt.pop %v497
        %v499 = vmul.f32 %v498, %v497
        %v500 = vmul.f32 %v499, %v498
        %v501 = vmul.f32 0.5, %v500
        %v502 = vsub.f32 1.5, %v501
        %v503 = vmul.f32 %v498, %v502
        %vm504 = vweird.f32 %v497
        %vm505 = vweird.f32 %v498
        %vm506 = vmor %vm504, %vm505
        %v507 = vsel %vm506, %v498, %v503
        %v508 = vmul.f32 %v491, %v507
        %v510 = vperm.slane %v478, 0
        %v512 = vmul.f32 %v508, %v510
        %v514 = vperm.slane %v479, 0
        %v516 = vadd.f32 %v512, %v514
        %517 = vst.msk [vmem:[%s338] sm:$0xff] %vm368, %v516
      $region56: #{vit_forward_pallas.7} parent=47 // pred_fallthru
        _
      %p518 = scmp.lt.s32.totalorder %s22, 1
      %s519 = scalar_select %p518, %s22, 1
      %s520 = smul.addr %s519, 8
      %s521 = scalar_lea.vmem %s7, %s520
      // Predicated region
      $region57: #{vit_forward_pallas.7} parent=47 // pred_check
        %p522 = pneg %p215
      $region58: #{vit_forward_pallas.7} parent=47 // pred_check_branch
        %524 = sbr.rel (%p522) target = $region60
      $region59: #{vit_forward_pallas.7} parent=47 // pred_region
        _
      $region60: #{vit_forward_pallas.7} parent=47 // pred_fallthru
        _
    $region48: #{vit_forward_pallas.7} parent=5 // pred_fallthru
      _
    %p525 = scmp.le.s32.totalorder 2, %s13
    // Predicated region
    $region61: #{vit_forward_pallas.7} parent=5 // pred_check
      %p526 = pneg %p525
    $region62: #{vit_forward_pallas.7} parent=5 // pred_check_branch
      %528 = sbr.rel (%p526) target = $region64
    $region63: #{vit_forward_pallas.7} parent=5 // pred_region
      %s529 = ssub.s32 %s13, 2
      // Predicated region
      $region65: #{vit_forward_pallas.7} parent=63 // pred_check
        %p530 = pneg %p221
      $region66: #{vit_forward_pallas.7} parent=63 // pred_check_branch
        %532 = sbr.rel (%p530) target = $region68
      $region67: #{vit_forward_pallas.7} parent=63 // pred_region
        %p533 = scmp.lt.s32.totalorder %s24, 1
        %s534 = scalar_select %p533, %s24, 1
        %s535 = smul.addr %s534, 8
        %s536 = scalar_lea.vmem %s7, %s535
      $region68: #{vit_forward_pallas.7} parent=63 // pred_fallthru
        _
    $region64: #{vit_forward_pallas.7} parent=5 // pred_fallthru
      _
  $region6: #{vit_forward_pallas.7} parent=0 // loop_footer
    %s17 = sadd.s32 1, %s13
  $region7: #{vit_forward_pallas.7} parent=0 // loop_footer_branch
    %12 = sbr.rel target = $region3
  $region8: #{vit_forward_pallas.7} parent=0 // loop_exit
    _

</llo_original>
